<compile_context>
chip_gen: v7x
topology: tpu7x:2x2x1
jax: 0.10.0
libtpu: 0.0.40
codegen_flags: <defaults>
</compile_context>

<pallas_src>
import functools

import jax
import jax.numpy as jnp
from jax import lax
from jax.experimental import pallas as pl
from jax.experimental.pallas import tpu as pltpu


def _round_up(x, m):
    return ((x + m - 1) // m) * m


def gru_encoder_kernel(x_ref, wih_ref, whh_ref, bih_ref, bhh_ref,
                       h_ref, gi_ref, *, num_chunks, last_steps):
    """Grid = (batch_blocks, num_chunks + 1); time axis innermost ("arbitrary").

    Software pipelining over time chunks: grid step c computes the input
    projection for chunk c (one big MXU matmul) into gi_ref[c % 2] while the
    strictly-serial recurrence consumes chunk c-1 from gi_ref[(c-1) % 2].

    x_ref   : (T, Bb, Dp)       embedded input chunk           (matmul dtype)
    wih_ref : (Dp, 3*Dp)        W_ih^T, per-gate padded        (matmul dtype)
    whh_ref : (Dp, 3*Dp)        W_hh^T, per-gate padded        (matmul dtype)
    bih_ref : (1, 3*Dp)         b_ih                           (f32)
    bhh_ref : (1, 3*Dp)         b_hh                           (f32)
    h_ref   : (1, Bb, Dp)       hidden state, VMEM-resident across the time axis
    gi_ref  : (2, T, Bb, 3*Dp)  double-buffered input-gate scratch (f32)
    """
    c = pl.program_id(1)
    T, Bb, Dp = x_ref.shape

    # PyTorch nn.GRU default: h0 = zeros.
    @pl.when(c == 0)
    def _():
        h_ref[...] = jnp.zeros_like(h_ref)

    # ---- Stage 1: input projection for chunk c (skipped on the drain step).
    @pl.when(c < num_chunks)
    def _():
        x_flat = x_ref[...].reshape(T * Bb, Dp)
        gi = jnp.dot(x_flat, wih_ref[...],
                     preferred_element_type=jnp.float32) + bih_ref[...]
        gi3 = gi.reshape(T, Bb, 3 * Dp)
        parity = lax.rem(c, 2)

        @pl.when(parity == 0)
        def _():
            gi_ref[0] = gi3

        @pl.when(parity == 1)
        def _():
            gi_ref[1] = gi3

    # ---- Stage 2: serial recurrence over chunk c-1 (GI produced last step).
    whh = whh_ref[...]
    bhh = jnp.broadcast_to(bhh_ref[...], (Bb, 3 * Dp))   # hoisted, once/chunk

    def run_recurrence(n_steps):
        slot = lax.rem(c + 1, 2)          # == (c - 1) % 2 for c >= 1
        gi_chunk = gi_ref.at[slot]        # ref view, no load

        def step(i, h):
            gi_t = gi_chunk[i]                                   # (Bb, 3*Dp)
            gh = jnp.dot(h.astype(whh.dtype), whh,
                         preferred_element_type=jnp.float32) + bhh
            # PyTorch gate order [r, z, n]; each gate slice is lane-aligned
            # because every gate block is padded to Dp (multiple of 128).
            r = jax.nn.sigmoid(gi_t[:, 0:Dp] + gh[:, 0:Dp])
            z = jax.nn.sigmoid(gi_t[:, Dp:2 * Dp] + gh[:, Dp:2 * Dp])
            n = jnp.tanh(gi_t[:, 2 * Dp:3 * Dp] + r * gh[:, 2 * Dp:3 * Dp])
            return (1.0 - z) * n + z * h

        h = lax.fori_loop(0, n_steps, step, h_ref[0], unroll=True)
        h_ref[0] = h

    if last_steps == T:
        # Every chunk (including the last) is full: single steady-state branch.
        @pl.when(c > 0)
        def _():
            run_recurrence(T)
    else:
        @pl.when(jnp.logical_and(c > 0, c < num_chunks))
        def _():
            run_recurrence(T)

        # Partial last chunk: statically fewer steps, no per-step masking.
        @pl.when(c == num_chunks)
        def _():
            run_recurrence(last_steps)


def _pad_gate_weight(w, d, dp):
    """(3D, D) PyTorch GRU weight -> (Dp, 3*Dp) transposed, per-gate padded."""
    w3 = w.reshape(3, d, d)                                   # (gate, out, in)
    w3t = jnp.transpose(w3, (0, 2, 1))                        # (gate, in, out)
    w3tp = jnp.pad(w3t, ((0, 0), (0, dp - d), (0, dp - d)))   # (3, Dp, Dp)
    return jnp.transpose(w3tp, (1, 0, 2)).reshape(dp, 3 * dp)  # (in, gate*Dp)


def _pad_gate_bias(b, d, dp):
    """(3D,) -> (1, 3*Dp) with per-gate padding."""
    b3 = jnp.pad(b.reshape(3, d), ((0, 0), (0, dp - d)))
    return b3.reshape(1, 3 * dp)


def gru_encoder_forward(tokens, params, *, time_chunk=32, batch_block=None,
                        matmul_dtype=jnp.bfloat16):
    """tokens: int32 (S, B). Returns h_n: f32 (1, B, d_model)."""
    emb_w = params["embedding"]            # (V, D)
    w_ih = params["w_ih"]                  # (3D, D) - PyTorch layout
    w_hh = params["w_hh"]                  # (3D, D)
    b_ih = params["b_ih"]                  # (3D,)
    b_hh = params["b_hh"]                  # (3D,)

    S, B = tokens.shape
    V, D = emb_w.shape

    # TPU-friendly padding: lanes (last dim) multiple of 128, sublanes of 8.
    Dp = _round_up(D, 128)
    Bp8 = _round_up(B, 8)
    if batch_block is None:
        Bb = Bp8
    else:
        Bb = min(_round_up(max(int(batch_block), 1), 8), Bp8)
    Bp = _round_up(Bp8, Bb)
    nb = Bp // Bb                           # batch blocks ("parallel" axis)

    T = max(1, min(int(time_chunk), S))
    num_chunks = (S + T - 1) // T
    Sp = num_chunks * T
    last_steps = S - (num_chunks - 1) * T   # static; in 1..T
    last_chunk = num_chunks - 1

    mm_bytes = jnp.dtype(matmul_dtype).itemsize

    # ---- Glue: embedding gather + weight re-layout (one cheap pass each) ---
    # Pad/cast the (V, D) table once so the gather emits (S, B, Dp) in the
    # final dtype directly.
    emb_p = jnp.pad(emb_w, ((0, 0), (0, Dp - D))).astype(matmul_dtype)
    x = jnp.take(emb_p, tokens, axis=0)                         # (S, B, Dp)
    x = jnp.pad(x, ((0, Sp - S), (0, Bp - B), (0, 0)))          # (Sp, Bp, Dp)

    wih_t = _pad_gate_weight(w_ih, D, Dp).astype(matmul_dtype)  # (Dp, 3Dp)
    whh_t = _pad_gate_weight(w_hh, D, Dp).astype(matmul_dtype)  # (Dp, 3Dp)
    bih2 = _pad_gate_bias(b_ih, D, Dp).astype(jnp.float32)      # (1, 3Dp)
    bhh2 = _pad_gate_bias(b_hh, D, Dp).astype(jnp.float32)      # (1, 3Dp)

    # ---- VMEM budget (x chunk x2 buffers, weights x1, gi scratch, h, biases)
    vmem_need = (
        2 * T * Bb * Dp * mm_bytes          # x chunk, double-buffered
        + 2 * Dp * 3 * Dp * mm_bytes        # W_ih^T + W_hh^T, single-buffered
        + 2 * 3 * Dp * 4                    # b_ih + b_hh
        + 2 * T * Bb * 3 * Dp * 4           # gi scratch (2 slots, f32)
        + 2 * Bb * Dp * 4                   # h output block
    )
    vmem_limit = int(min(max(1.5 * vmem_need + (2 << 20), 32 << 20), 128 << 20))

    def _resident_spec(shape, index_map):
        # Constant-index operands: single-buffering halves resident VMEM
        # (double-buffering a never-changing block buys nothing).
        try:
            return pl.BlockSpec(shape, index_map, pipeline_mode=pl.Buffered(1))
        except (TypeError, AttributeError):   # older jax: default buffering
            return pl.BlockSpec(shape, index_map)

    kernel = functools.partial(gru_encoder_kernel,
                               num_chunks=num_chunks, last_steps=last_steps)

    h_pad = pl.pallas_call(
        kernel,
        out_shape=jax.ShapeDtypeStruct((1, Bp, Dp), jnp.float32),
        grid_spec=pltpu.PrefetchScalarGridSpec(
            num_scalar_prefetch=0,
            grid=(nb, num_chunks + 1),        # (+1 drain step for pipelining)
            in_specs=[
                # x chunk: clamp the drain step to the last real chunk (the
                # block index is unchanged there, so no extra DMA is issued).
                pl.BlockSpec((T, Bb, Dp),
                             lambda b, c: (jnp.minimum(c, last_chunk), b, 0)),
                _resident_spec((Dp, 3 * Dp), lambda b, c: (0, 0)),   # W_ih^T
                _resident_spec((Dp, 3 * Dp), lambda b, c: (0, 0)),   # W_hh^T
                _resident_spec((1, 3 * Dp), lambda b, c: (0, 0)),    # b_ih
                _resident_spec((1, 3 * Dp), lambda b, c: (0, 0)),    # b_hh
            ],
            # Constant index over the time axis: hidden state stays resident
            # in VMEM across the whole sequence for each batch block.
            out_specs=pl.BlockSpec((1, Bb, Dp), lambda b, c: (0, b, 0)),
            scratch_shapes=[pltpu.VMEM((2, T, Bb, 3 * Dp), jnp.float32)],
        ),
        compiler_params=pltpu.CompilerParams(
            dimension_semantics=("parallel", "arbitrary"),
            vmem_limit_bytes=vmem_limit),
    )(x, wih_t, whh_t, bih2, bhh2)

    return h_pad[:, :B, :D]


def reference_forward(tokens, params):
    """Pure-JAX reference mirroring PyTorch GRU_Encoder.forward (h0 = zeros)."""
    emb_w = params["embedding"]
    w_ih, w_hh = params["w_ih"], params["w_hh"]
    b_ih, b_hh = params["b_ih"], params["b_hh"]
    D = emb_w.shape[1]
    B = tokens.shape[1]

    embedded = jnp.take(emb_w, tokens, axis=0)     # (S, B, D)
    h = jnp.zeros((B, D), jnp.float32)
    for t in range(tokens.shape[0]):
        x_t = embedded[t]
        gi = x_t @ w_ih.T + b_ih
        gh = h @ w_hh.T + b_hh
        r = jax.nn.sigmoid(gi[:, 0:D] + gh[:, 0:D])
        z = jax.nn.sigmoid(gi[:, D:2 * D] + gh[:, D:2 * D])
        n = jnp.tanh(gi[:, 2 * D:3 * D] + r * gh[:, 2 * D:3 * D])
        h = (1.0 - z) * n + z * h
    return h[None]                                 # (1, B, D)


def init_params(key, input_size, d_model):
    """PyTorch-style init: normal embedding, uniform GRU weights/biases."""
    ks = jax.random.split(key, 5)
    bound = 1.0 / jnp.sqrt(d_model)
    return {
        "embedding": jax.random.normal(ks[0], (input_size, d_model), jnp.float32),
        "w_ih": jax.random.uniform(ks[1], (3 * d_model, d_model), jnp.float32, -bound, bound),
        "w_hh": jax.random.uniform(ks[2], (3 * d_model, d_model), jnp.float32, -bound, bound),
        "b_ih": jax.random.uniform(ks[3], (3 * d_model,), jnp.float32, -bound, bound),
        "b_hh": jax.random.uniform(ks[4], (3 * d_model,), jnp.float32, -bound, bound),
    }


if __name__ == "__main__":
    vocab, d_model = 16, 32

    key = jax.random.PRNGKey(0)
    k_params, k_tok1, k_tok2 = jax.random.split(key, 3)
    params = init_params(k_params, vocab, d_model)

    # Case 1: bf16 MXU operands (production default); multiple time chunks
    # plus a partial last chunk (exercises steady-state + drain paths).
    seq_len, batch = 10, 4
    tokens = jax.random.randint(k_tok1, (seq_len, batch), 0, vocab, jnp.int32)
    h_bf16 = jax.block_until_ready(
        gru_encoder_forward(tokens, params, time_chunk=4,
                            matmul_dtype=jnp.bfloat16))
    ref = reference_forward(tokens, params)
    assert h_bf16.shape == (1, batch, d_model)
    err = float(jnp.max(jnp.abs(h_bf16 - ref)))
    assert jnp.allclose(h_bf16, ref, atol=5e-2, rtol=5e-2), err

    # Case 2: f32 operands, two batch blocks on the "parallel" grid axis
    # (v7x megacore path) and an exactly-divisible sequence length.
    seq_len2, batch2 = 8, 12
    tokens2 = jax.random.randint(k_tok2, (seq_len2, batch2), 0, vocab, jnp.int32)
    h_f32 = jax.block_until_ready(
        gru_encoder_forward(tokens2, params, time_chunk=4, batch_block=8,
                            matmul_dtype=jnp.float32))
    ref2 = reference_forward(tokens2, params)
    assert h_f32.shape == (1, batch2, d_model)
    err2 = float(jnp.max(jnp.abs(h_f32 - ref2)))
    assert jnp.allclose(h_f32, ref2, atol=5e-3, rtol=5e-3), err2

    print("KERNEL_OK")
</pallas_src>

<mosaic_0001>
module attributes {stable_mosaic.version = 11 : i64} {
  func.func @gru_encoder_kernel(%arg0: i32, %arg1: i32, %arg2: memref<4x8x128xbf16, #tpu.memory_space<vmem>>, %arg3: memref<128x384xbf16, #tpu.memory_space<vmem>>, %arg4: memref<128x384xbf16, #tpu.memory_space<vmem>>, %arg5: memref<1x384xf32, #tpu.memory_space<vmem>>, %arg6: memref<1x384xf32, #tpu.memory_space<vmem>>, %arg7: memref<1x8x128xf32, #tpu.memory_space<vmem>>, %arg8: memref<2x4x8x384xf32, #tpu.memory_space<vmem>>) attributes {dimension_semantics = [#tpu.dimension_semantics<parallel>, #tpu.dimension_semantics<arbitrary>], iteration_bounds = array<i64: 1, 4>, scalar_prefetch = 0 : i64, scratch_operands = 1 : i64, tpu.core_type = #tpu.core_type<tc>, window_params = [{transform_indices = @transform_0, window_bounds = array<i64: 4, 8, 128>}, {pipeline_mode = #tpu.pipeline_mode<synchronous>, transform_indices = @transform_1, window_bounds = array<i64: 128, 384>}, {pipeline_mode = #tpu.pipeline_mode<synchronous>, transform_indices = @transform_2, window_bounds = array<i64: 128, 384>}, {pipeline_mode = #tpu.pipeline_mode<synchronous>, transform_indices = @transform_3, window_bounds = array<i64: 1, 384>}, {pipeline_mode = #tpu.pipeline_mode<synchronous>, transform_indices = @transform_4, window_bounds = array<i64: 1, 384>}, {transform_indices = @transform_5, window_bounds = array<i64: 1, 8, 128>}]} {
    %c0_i32 = arith.constant 0 : i32
    %0 = arith.cmpi eq, %arg1, %c0_i32 : i32
    %1 = arith.extui %0 : i1 to i32
    %c0_i32_0 = arith.constant 0 : i32
    %2 = arith.cmpi ne, %1, %c0_i32_0 : i32
    scf.if %2 {
      %cst = arith.constant 0.000000e+00 : f32
      %18 = vector.broadcast %cst : f32 to vector<1x8x128xf32>
      %c0_10 = arith.constant 0 : index
      %c0_11 = arith.constant 0 : index
      %c0_12 = arith.constant 0 : index
      %19 = vector.load %arg7[%c0_10, %c0_11, %c0_12] : memref<1x8x128xf32, #tpu.memory_space<vmem>>, vector<1x8x128xf32>
      tpu.vector_store %arg7[%c0_10, %c0_11, %c0_12], %18 {strides = array<i32>} : memref<1x8x128xf32, #tpu.memory_space<vmem>>, vector<1x8x128xf32>,
    } else {
    }
    %c3_i32 = arith.constant 3 : i32
    %3 = arith.cmpi slt, %arg1, %c3_i32 : i32
    %4 = arith.extui %3 : i1 to i32
    %c0_i32_1 = arith.constant 0 : i32
    %5 = arith.cmpi ne, %4, %c0_i32_1 : i32
    scf.if %5 {
      %c0_10 = arith.constant 0 : index
      %c0_11 = arith.constant 0 : index
      %c0_12 = arith.constant 0 : index
      %18 = vector.load %arg2[%c0_10, %c0_11, %c0_12] : memref<4x8x128xbf16, #tpu.memory_space<vmem>>, vector<4x8x128xbf16>
      %19 = vector.shape_cast %18 : vector<4x8x128xbf16> to vector<32x128xbf16>
      %c0_13 = arith.constant 0 : index
      %c0_14 = arith.constant 0 : index
      %20 = vector.load %arg3[%c0_13, %c0_14] : memref<128x384xbf16, #tpu.memory_space<vmem>>, vector<128x384xbf16>
      %cst = arith.constant dense<0.000000e+00> : vector<32x384xf32>
      %21 = tpu.matmul %19, %20, %cst {dimension_numbers = #tpu.dot_dimension_numbers<[1], [0], [0], [1], [0, 0, 1, 1], [], []>} : vector<32x128xbf16>, vector<128x384xbf16>, vector<32x384xf32> -> vector<32x384xf32>
      %c0_15 = arith.constant 0 : index
      %c0_16 = arith.constant 0 : index
      %22 = vector.load %arg5[%c0_15, %c0_16] : memref<1x384xf32, #tpu.memory_space<vmem>>, vector<1x384xf32>
      %23 = vector.broadcast %22 : vector<1x384xf32> to vector<32x384xf32>
      %24 = arith.addf %21, %23 : vector<32x384xf32>
      %25 = vector.shape_cast %24 : vector<32x384xf32> to vector<4x8x384xf32>
      %c2_i32 = arith.constant 2 : i32
      %26 = arith.remsi %arg1, %c2_i32 : i32
      %c0_i32_17 = arith.constant 0 : i32
      %27 = arith.cmpi eq, %26, %c0_i32_17 : i32
      %28 = arith.extui %27 : i1 to i32
      %c0_i32_18 = arith.constant 0 : i32
      %29 = arith.cmpi ne, %28, %c0_i32_18 : i32
      scf.if %29 {
        %c0_20 = arith.constant 0 : index
        %c0_21 = arith.constant 0 : index
        %c0_22 = arith.constant 0 : index
        %c0_23 = arith.constant 0 : index
        %33 = vector.load %arg8[%c0_20, %c0_21, %c0_22, %c0_23] : memref<2x4x8x384xf32, #tpu.memory_space<vmem>>, vector<1x4x8x384xf32>
        %34 = vector.shape_cast %33 : vector<1x4x8x384xf32> to vector<4x8x384xf32>
        %35 = vector.shape_cast %25 : vector<4x8x384xf32> to vector<1x4x8x384xf32>
        tpu.vector_store %arg8[%c0_20, %c0_21, %c0_22, %c0_23], %35 {strides = array<i32>} : memref<2x4x8x384xf32, #tpu.memory_space<vmem>>, vector<1x4x8x384xf32>,
      } else {
      }
      %c1_i32 = arith.constant 1 : i32
      %30 = arith.cmpi eq, %26, %c1_i32 : i32
      %31 = arith.extui %30 : i1 to i32
      %c0_i32_19 = arith.constant 0 : i32
      %32 = arith.cmpi ne, %31, %c0_i32_19 : i32
      scf.if %32 {
        %c1 = arith.constant 1 : index
        %c0_20 = arith.constant 0 : index
        %c0_21 = arith.constant 0 : index
        %c0_22 = arith.constant 0 : index
        %33 = vector.load %arg8[%c1, %c0_20, %c0_21, %c0_22] : memref<2x4x8x384xf32, #tpu.memory_space<vmem>>, vector<1x4x8x384xf32>
        %34 = vector.shape_cast %33 : vector<1x4x8x384xf32> to vector<4x8x384xf32>
        %35 = vector.shape_cast %25 : vector<4x8x384xf32> to vector<1x4x8x384xf32>
        tpu.vector_store %arg8[%c1, %c0_20, %c0_21, %c0_22], %35 {strides = array<i32>} : memref<2x4x8x384xf32, #tpu.memory_space<vmem>>, vector<1x4x8x384xf32>,
      } else {
      }
    } else {
    }
    %c0 = arith.constant 0 : index
    %c0_2 = arith.constant 0 : index
    %6 = vector.load %arg4[%c0, %c0_2] : memref<128x384xbf16, #tpu.memory_space<vmem>>, vector<128x384xbf16>
    %c0_3 = arith.constant 0 : index
    %c0_4 = arith.constant 0 : index
    %7 = vector.load %arg6[%c0_3, %c0_4] : memref<1x384xf32, #tpu.memory_space<vmem>>, vector<1x384xf32>
    %8 = vector.shape_cast %7 : vector<1x384xf32> to vector<1x384xf32>
    %9 = vector.broadcast %8 : vector<1x384xf32> to vector<8x384xf32>
    %c0_i32_5 = arith.constant 0 : i32
    %10 = arith.cmpi sgt, %arg1, %c0_i32_5 : i32
    %c3_i32_6 = arith.constant 3 : i32
    %11 = arith.cmpi slt, %arg1, %c3_i32_6 : i32
    %12 = arith.andi %10, %11 : i1
    %13 = arith.extui %12 : i1 to i32
    %c0_i32_7 = arith.constant 0 : i32
    %14 = arith.cmpi ne, %13, %c0_i32_7 : i32
    scf.if %14 {
      %c1_i32 = arith.constant 1 : i32
      %18 = arith.addi %arg1, %c1_i32 : i32
      %c2_i32 = arith.constant 2 : i32
      %19 = arith.remsi %18, %c2_i32 : i32
      %c0_10 = arith.constant 0 : index
      %c0_11 = arith.constant 0 : index
      %c0_12 = arith.constant 0 : index
      %20 = vector.load %arg7[%c0_10, %c0_11, %c0_12] : memref<1x8x128xf32, #tpu.memory_space<vmem>>, vector<1x8x128xf32>
      %21 = vector.shape_cast %20 : vector<1x8x128xf32> to vector<8x128xf32>
      %c0_i32_13 = arith.constant 0 : i32
      %c0_i32_14 = arith.constant 0 : i32
      %c0_i32_15 = arith.constant 0 : i32
      %c0_i32_16 = arith.constant 0 : i32
      %22 = tpu.memref_slice %arg8[%19, %c0_i32_14, %c0_i32_15, %c0_i32_16] : memref<2x4x8x384xf32, #tpu.memory_space<vmem>> -> memref<1x4x8x384xf32, #tpu.memory_space<vmem>>
      %23 = tpu.memref_squeeze %22 : memref<1x4x8x384xf32, #tpu.memory_space<vmem>> -> memref<4x8x384xf32, #tpu.memory_space<vmem>>
      %24 = arith.index_cast %c0_i32_13 : i32 to index
      %c0_17 = arith.constant 0 : index
      %c0_18 = arith.constant 0 : index
      %25 = vector.load %23[%24, %c0_17, %c0_18] : memref<4x8x384xf32, #tpu.memory_space<vmem>>, vector<1x8x384xf32>
      %26 = vector.shape_cast %25 : vector<1x8x384xf32> to vector<8x384xf32>
      %27 = arith.truncf %21 : vector<8x128xf32> to vector<8x128xbf16>
      %cst = arith.constant dense<0.000000e+00> : vector<8x384xf32>
      %28 = tpu.matmul %27, %6, %cst {dimension_numbers = #tpu.dot_dimension_numbers<[1], [0], [0], [1], [0, 0, 1, 1], [], []>} : vector<8x128xbf16>, vector<128x384xbf16>, vector<8x384xf32> -> vector<8x384xf32>
      %29 = arith.addf %28, %9 : vector<8x384xf32>
      %30 = vector.extract_strided_slice %26 {offsets = [0, 0], sizes = [8, 128], strides = [1, 1]} : vector<8x384xf32> to vector<8x128xf32>
      %31 = vector.extract_strided_slice %29 {offsets = [0, 0], sizes = [8, 128], strides = [1, 1]} : vector<8x384xf32> to vector<8x128xf32>
      %32 = arith.addf %30, %31 : vector<8x128xf32>
      %33 = arith.negf %32 : vector<8x128xf32>
      %34 = math.exp %33 : vector<8x128xf32>
      %cst_19 = arith.constant 1.000000e+00 : f32
      %35 = vector.broadcast %cst_19 : f32 to vector<8x128xf32>
      %36 = arith.addf %35, %34 : vector<8x128xf32>
      %37 = arith.divf %35, %36 : vector<8x128xf32>
      %38 = vector.extract_strided_slice %26 {offsets = [0, 128], sizes = [8, 128], strides = [1, 1]} : vector<8x384xf32> to vector<8x128xf32>
      %39 = vector.extract_strided_slice %29 {offsets = [0, 128], sizes = [8, 128], strides = [1, 1]} : vector<8x384xf32> to vector<8x128xf32>
      %40 = arith.addf %38, %39 : vector<8x128xf32>
      %41 = arith.negf %40 : vector<8x128xf32>
      %42 = math.exp %41 : vector<8x128xf32>
      %cst_20 = arith.constant 1.000000e+00 : f32
      %43 = vector.broadcast %cst_20 : f32 to vector<8x128xf32>
      %44 = arith.addf %43, %42 : vector<8x128xf32>
      %45 = arith.divf %43, %44 : vector<8x128xf32>
      %46 = vector.extract_strided_slice %26 {offsets = [0, 256], sizes = [8, 128], strides = [1, 1]} : vector<8x384xf32> to vector<8x128xf32>
      %47 = vector.extract_strided_slice %29 {offsets = [0, 256], sizes = [8, 128], strides = [1, 1]} : vector<8x384xf32> to vector<8x128xf32>
      %48 = arith.mulf %37, %47 : vector<8x128xf32>
      %49 = arith.addf %46, %48 : vector<8x128xf32>
      %50 = math.tanh %49 : vector<8x128xf32>
      %cst_21 = arith.constant 1.000000e+00 : f32
      %51 = vector.broadcast %cst_21 : f32 to vector<8x128xf32>
      %52 = arith.subf %51, %45 : vector<8x128xf32>
      %53 = arith.mulf %52, %50 : vector<8x128xf32>
      %54 = arith.mulf %45, %21 : vector<8x128xf32>
      %55 = arith.addf %53, %54 : vector<8x128xf32>
      %c1_i32_22 = arith.constant 1 : i32
      %c0_i32_23 = arith.constant 0 : i32
      %c0_i32_24 = arith.constant 0 : i32
      %c0_i32_25 = arith.constant 0 : i32
      %56 = tpu.memref_slice %arg8[%19, %c0_i32_23, %c0_i32_24, %c0_i32_25] : memref<2x4x8x384xf32, #tpu.memory_space<vmem>> -> memref<1x4x8x384xf32, #tpu.memory_space<vmem>>
      %57 = tpu.memref_squeeze %56 : memref<1x4x8x384xf32, #tpu.memory_space<vmem>> -> memref<4x8x384xf32, #tpu.memory_space<vmem>>
      %58 = arith.index_cast %c1_i32_22 : i32 to index
      %c0_26 = arith.constant 0 : index
      %c0_27 = arith.constant 0 : index
      %59 = vector.load %57[%58, %c0_26, %c0_27] : memref<4x8x384xf32, #tpu.memory_space<vmem>>, vector<1x8x384xf32>
      %60 = vector.shape_cast %59 : vector<1x8x384xf32> to vector<8x384xf32>
      %61 = arith.truncf %55 : vector<8x128xf32> to vector<8x128xbf16>
      %cst_28 = arith.constant dense<0.000000e+00> : vector<8x384xf32>
      %62 = tpu.matmul %61, %6, %cst_28 {dimension_numbers = #tpu.dot_dimension_numbers<[1], [0], [0], [1], [0, 0, 1, 1], [], []>} : vector<8x128xbf16>, vector<128x384xbf16>, vector<8x384xf32> -> vector<8x384xf32>
      %63 = arith.addf %62, %9 : vector<8x384xf32>
      %64 = vector.extract_strided_slice %60 {offsets = [0, 0], sizes = [8, 128], strides = [1, 1]} : vector<8x384xf32> to vector<8x128xf32>
      %65 = vector.extract_strided_slice %63 {offsets = [0, 0], sizes = [8, 128], strides = [1, 1]} : vector<8x384xf32> to vector<8x128xf32>
      %66 = arith.addf %64, %65 : vector<8x128xf32>
      %67 = arith.negf %66 : vector<8x128xf32>
      %68 = math.exp %67 : vector<8x128xf32>
      %cst_29 = arith.constant 1.000000e+00 : f32
      %69 = vector.broadcast %cst_29 : f32 to vector<8x128xf32>
      %70 = arith.addf %69, %68 : vector<8x128xf32>
      %71 = arith.divf %69, %70 : vector<8x128xf32>
      %72 = vector.extract_strided_slice %60 {offsets = [0, 128], sizes = [8, 128], strides = [1, 1]} : vector<8x384xf32> to vector<8x128xf32>
      %73 = vector.extract_strided_slice %63 {offsets = [0, 128], sizes = [8, 128], strides = [1, 1]} : vector<8x384xf32> to vector<8x128xf32>
      %74 = arith.addf %72, %73 : vector<8x128xf32>
      %75 = arith.negf %74 : vector<8x128xf32>
      %76 = math.exp %75 : vector<8x128xf32>
      %cst_30 = arith.constant 1.000000e+00 : f32
      %77 = vector.broadcast %cst_30 : f32 to vector<8x128xf32>
      %78 = arith.addf %77, %76 : vector<8x128xf32>
      %79 = arith.divf %77, %78 : vector<8x128xf32>
      %80 = vector.extract_strided_slice %60 {offsets = [0, 256], sizes = [8, 128], strides = [1, 1]} : vector<8x384xf32> to vector<8x128xf32>
      %81 = vector.extract_strided_slice %63 {offsets = [0, 256], sizes = [8, 128], strides = [1, 1]} : vector<8x384xf32> to vector<8x128xf32>
      %82 = arith.mulf %71, %81 : vector<8x128xf32>
      %83 = arith.addf %80, %82 : vector<8x128xf32>
      %84 = math.tanh %83 : vector<8x128xf32>
      %cst_31 = arith.constant 1.000000e+00 : f32
      %85 = vector.broadcast %cst_31 : f32 to vector<8x128xf32>
      %86 = arith.subf %85, %79 : vector<8x128xf32>
      %87 = arith.mulf %86, %84 : vector<8x128xf32>
      %88 = arith.mulf %79, %55 : vector<8x128xf32>
      %89 = arith.addf %87, %88 : vector<8x128xf32>
      %c2_i32_32 = arith.constant 2 : i32
      %c0_i32_33 = arith.constant 0 : i32
      %c0_i32_34 = arith.constant 0 : i32
      %c0_i32_35 = arith.constant 0 : i32
      %90 = tpu.memref_slice %arg8[%19, %c0_i32_33, %c0_i32_34, %c0_i32_35] : memref<2x4x8x384xf32, #tpu.memory_space<vmem>> -> memref<1x4x8x384xf32, #tpu.memory_space<vmem>>
      %91 = tpu.memref_squeeze %90 : memref<1x4x8x384xf32, #tpu.memory_space<vmem>> -> memref<4x8x384xf32, #tpu.memory_space<vmem>>
      %92 = arith.index_cast %c2_i32_32 : i32 to index
      %c0_36 = arith.constant 0 : index
      %c0_37 = arith.constant 0 : index
      %93 = vector.load %91[%92, %c0_36, %c0_37] : memref<4x8x384xf32, #tpu.memory_space<vmem>>, vector<1x8x384xf32>
      %94 = vector.shape_cast %93 : vector<1x8x384xf32> to vector<8x384xf32>
      %95 = arith.truncf %89 : vector<8x128xf32> to vector<8x128xbf16>
      %cst_38 = arith.constant dense<0.000000e+00> : vector<8x384xf32>
      %96 = tpu.matmul %95, %6, %cst_38 {dimension_numbers = #tpu.dot_dimension_numbers<[1], [0], [0], [1], [0, 0, 1, 1], [], []>} : vector<8x128xbf16>, vector<128x384xbf16>, vector<8x384xf32> -> vector<8x384xf32>
      %97 = arith.addf %96, %9 : vector<8x384xf32>
      %98 = vector.extract_strided_slice %94 {offsets = [0, 0], sizes = [8, 128], strides = [1, 1]} : vector<8x384xf32> to vector<8x128xf32>
      %99 = vector.extract_strided_slice %97 {offsets = [0, 0], sizes = [8, 128], strides = [1, 1]} : vector<8x384xf32> to vector<8x128xf32>
      %100 = arith.addf %98, %99 : vector<8x128xf32>
      %101 = arith.negf %100 : vector<8x128xf32>
      %102 = math.exp %101 : vector<8x128xf32>
      %cst_39 = arith.constant 1.000000e+00 : f32
      %103 = vector.broadcast %cst_39 : f32 to vector<8x128xf32>
      %104 = arith.addf %103, %102 : vector<8x128xf32>
      %105 = arith.divf %103, %104 : vector<8x128xf32>
      %106 = vector.extract_strided_slice %94 {offsets = [0, 128], sizes = [8, 128], strides = [1, 1]} : vector<8x384xf32> to vector<8x128xf32>
      %107 = vector.extract_strided_slice %97 {offsets = [0, 128], sizes = [8, 128], strides = [1, 1]} : vector<8x384xf32> to vector<8x128xf32>
      %108 = arith.addf %106, %107 : vector<8x128xf32>
      %109 = arith.negf %108 : vector<8x128xf32>
      %110 = math.exp %109 : vector<8x128xf32>
      %cst_40 = arith.constant 1.000000e+00 : f32
      %111 = vector.broadcast %cst_40 : f32 to vector<8x128xf32>
      %112 = arith.addf %111, %110 : vector<8x128xf32>
      %113 = arith.divf %111, %112 : vector<8x128xf32>
      %114 = vector.extract_strided_slice %94 {offsets = [0, 256], sizes = [8, 128], strides = [1, 1]} : vector<8x384xf32> to vector<8x128xf32>
      %115 = vector.extract_strided_slice %97 {offsets = [0, 256], sizes = [8, 128], strides = [1, 1]} : vector<8x384xf32> to vector<8x128xf32>
      %116 = arith.mulf %105, %115 : vector<8x128xf32>
      %117 = arith.addf %114, %116 : vector<8x128xf32>
      %118 = math.tanh %117 : vector<8x128xf32>
      %cst_41 = arith.constant 1.000000e+00 : f32
      %119 = vector.broadcast %cst_41 : f32 to vector<8x128xf32>
      %120 = arith.subf %119, %113 : vector<8x128xf32>
      %121 = arith.mulf %120, %118 : vector<8x128xf32>
      %122 = arith.mulf %113, %89 : vector<8x128xf32>
      %123 = arith.addf %121, %122 : vector<8x128xf32>
      %c3_i32_42 = arith.constant 3 : i32
      %c0_i32_43 = arith.constant 0 : i32
      %c0_i32_44 = arith.constant 0 : i32
      %c0_i32_45 = arith.constant 0 : i32
      %124 = tpu.memref_slice %arg8[%19, %c0_i32_43, %c0_i32_44, %c0_i32_45] : memref<2x4x8x384xf32, #tpu.memory_space<vmem>> -> memref<1x4x8x384xf32, #tpu.memory_space<vmem>>
      %125 = tpu.memref_squeeze %124 : memref<1x4x8x384xf32, #tpu.memory_space<vmem>> -> memref<4x8x384xf32, #tpu.memory_space<vmem>>
      %126 = arith.index_cast %c3_i32_42 : i32 to index
      %c0_46 = arith.constant 0 : index
      %c0_47 = arith.constant 0 : index
      %127 = vector.load %125[%126, %c0_46, %c0_47] : memref<4x8x384xf32, #tpu.memory_space<vmem>>, vector<1x8x384xf32>
      %128 = vector.shape_cast %127 : vector<1x8x384xf32> to vector<8x384xf32>
      %129 = arith.truncf %123 : vector<8x128xf32> to vector<8x128xbf16>
      %cst_48 = arith.constant dense<0.000000e+00> : vector<8x384xf32>
      %130 = tpu.matmul %129, %6, %cst_48 {dimension_numbers = #tpu.dot_dimension_numbers<[1], [0], [0], [1], [0, 0, 1, 1], [], []>} : vector<8x128xbf16>, vector<128x384xbf16>, vector<8x384xf32> -> vector<8x384xf32>
      %131 = arith.addf %130, %9 : vector<8x384xf32>
      %132 = vector.extract_strided_slice %128 {offsets = [0, 0], sizes = [8, 128], strides = [1, 1]} : vector<8x384xf32> to vector<8x128xf32>
      %133 = vector.extract_strided_slice %131 {offsets = [0, 0], sizes = [8, 128], strides = [1, 1]} : vector<8x384xf32> to vector<8x128xf32>
      %134 = arith.addf %132, %133 : vector<8x128xf32>
      %135 = arith.negf %134 : vector<8x128xf32>
      %136 = math.exp %135 : vector<8x128xf32>
      %cst_49 = arith.constant 1.000000e+00 : f32
      %137 = vector.broadcast %cst_49 : f32 to vector<8x128xf32>
      %138 = arith.addf %137, %136 : vector<8x128xf32>
      %139 = arith.divf %137, %138 : vector<8x128xf32>
      %140 = vector.extract_strided_slice %128 {offsets = [0, 128], sizes = [8, 128], strides = [1, 1]} : vector<8x384xf32> to vector<8x128xf32>
      %141 = vector.extract_strided_slice %131 {offsets = [0, 128], sizes = [8, 128], strides = [1, 1]} : vector<8x384xf32> to vector<8x128xf32>
      %142 = arith.addf %140, %141 : vector<8x128xf32>
      %143 = arith.negf %142 : vector<8x128xf32>
      %144 = math.exp %143 : vector<8x128xf32>
      %cst_50 = arith.constant 1.000000e+00 : f32
      %145 = vector.broadcast %cst_50 : f32 to vector<8x128xf32>
      %146 = arith.addf %145, %144 : vector<8x128xf32>
      %147 = arith.divf %145, %146 : vector<8x128xf32>
      %148 = vector.extract_strided_slice %128 {offsets = [0, 256], sizes = [8, 128], strides = [1, 1]} : vector<8x384xf32> to vector<8x128xf32>
      %149 = vector.extract_strided_slice %131 {offsets = [0, 256], sizes = [8, 128], strides = [1, 1]} : vector<8x384xf32> to vector<8x128xf32>
      %150 = arith.mulf %139, %149 : vector<8x128xf32>
      %151 = arith.addf %148, %150 : vector<8x128xf32>
      %152 = math.tanh %151 : vector<8x128xf32>
      %cst_51 = arith.constant 1.000000e+00 : f32
      %153 = vector.broadcast %cst_51 : f32 to vector<8x128xf32>
      %154 = arith.subf %153, %147 : vector<8x128xf32>
      %155 = arith.mulf %154, %152 : vector<8x128xf32>
      %156 = arith.mulf %147, %123 : vector<8x128xf32>
      %157 = arith.addf %155, %156 : vector<8x128xf32>
      %c4_i32 = arith.constant 4 : i32
      %c0_52 = arith.constant 0 : index
      %c0_53 = arith.constant 0 : index
      %c0_54 = arith.constant 0 : index
      %158 = vector.load %arg7[%c0_52, %c0_53, %c0_54] : memref<1x8x128xf32, #tpu.memory_space<vmem>>, vector<1x8x128xf32>
      %159 = vector.shape_cast %158 : vector<1x8x128xf32> to vector<8x128xf32>
      %160 = vector.shape_cast %157 : vector<8x128xf32> to vector<1x8x128xf32>
      tpu.vector_store %arg7[%c0_52, %c0_53, %c0_54], %160 {strides = array<i32>} : memref<1x8x128xf32, #tpu.memory_space<vmem>>, vector<1x8x128xf32>,
    } else {
    }
    %c3_i32_8 = arith.constant 3 : i32
    %15 = arith.cmpi eq, %arg1, %c3_i32_8 : i32
    %16 = arith.extui %15 : i1 to i32
    %c0_i32_9 = arith.constant 0 : i32
    %17 = arith.cmpi ne, %16, %c0_i32_9 : i32
    scf.if %17 {
      %c1_i32 = arith.constant 1 : i32
      %18 = arith.addi %arg1, %c1_i32 : i32
      %c2_i32 = arith.constant 2 : i32
      %19 = arith.remsi %18, %c2_i32 : i32
      %c0_10 = arith.constant 0 : index
      %c0_11 = arith.constant 0 : index
      %c0_12 = arith.constant 0 : index
      %20 = vector.load %arg7[%c0_10, %c0_11, %c0_12] : memref<1x8x128xf32, #tpu.memory_space<vmem>>, vector<1x8x128xf32>
      %21 = vector.shape_cast %20 : vector<1x8x128xf32> to vector<8x128xf32>
      %c0_i32_13 = arith.constant 0 : i32
      %c0_i32_14 = arith.constant 0 : i32
      %c0_i32_15 = arith.constant 0 : i32
      %c0_i32_16 = arith.constant 0 : i32
      %22 = tpu.memref_slice %arg8[%19, %c0_i32_14, %c0_i32_15, %c0_i32_16] : memref<2x4x8x384xf32, #tpu.memory_space<vmem>> -> memref<1x4x8x384xf32, #tpu.memory_space<vmem>>
      %23 = tpu.memref_squeeze %22 : memref<1x4x8x384xf32, #tpu.memory_space<vmem>> -> memref<4x8x384xf32, #tpu.memory_space<vmem>>
      %24 = arith.index_cast %c0_i32_13 : i32 to index
      %c0_17 = arith.constant 0 : index
      %c0_18 = arith.constant 0 : index
      %25 = vector.load %23[%24, %c0_17, %c0_18] : memref<4x8x384xf32, #tpu.memory_space<vmem>>, vector<1x8x384xf32>
      %26 = vector.shape_cast %25 : vector<1x8x384xf32> to vector<8x384xf32>
      %27 = arith.truncf %21 : vector<8x128xf32> to vector<8x128xbf16>
      %cst = arith.constant dense<0.000000e+00> : vector<8x384xf32>
      %28 = tpu.matmul %27, %6, %cst {dimension_numbers = #tpu.dot_dimension_numbers<[1], [0], [0], [1], [0, 0, 1, 1], [], []>} : vector<8x128xbf16>, vector<128x384xbf16>, vector<8x384xf32> -> vector<8x384xf32>
      %29 = arith.addf %28, %9 : vector<8x384xf32>
      %30 = vector.extract_strided_slice %26 {offsets = [0, 0], sizes = [8, 128], strides = [1, 1]} : vector<8x384xf32> to vector<8x128xf32>
      %31 = vector.extract_strided_slice %29 {offsets = [0, 0], sizes = [8, 128], strides = [1, 1]} : vector<8x384xf32> to vector<8x128xf32>
      %32 = arith.addf %30, %31 : vector<8x128xf32>
      %33 = arith.negf %32 : vector<8x128xf32>
      %34 = math.exp %33 : vector<8x128xf32>
      %cst_19 = arith.constant 1.000000e+00 : f32
      %35 = vector.broadcast %cst_19 : f32 to vector<8x128xf32>
      %36 = arith.addf %35, %34 : vector<8x128xf32>
      %37 = arith.divf %35, %36 : vector<8x128xf32>
      %38 = vector.extract_strided_slice %26 {offsets = [0, 128], sizes = [8, 128], strides = [1, 1]} : vector<8x384xf32> to vector<8x128xf32>
      %39 = vector.extract_strided_slice %29 {offsets = [0, 128], sizes = [8, 128], strides = [1, 1]} : vector<8x384xf32> to vector<8x128xf32>
      %40 = arith.addf %38, %39 : vector<8x128xf32>
      %41 = arith.negf %40 : vector<8x128xf32>
      %42 = math.exp %41 : vector<8x128xf32>
      %cst_20 = arith.constant 1.000000e+00 : f32
      %43 = vector.broadcast %cst_20 : f32 to vector<8x128xf32>
      %44 = arith.addf %43, %42 : vector<8x128xf32>
      %45 = arith.divf %43, %44 : vector<8x128xf32>
      %46 = vector.extract_strided_slice %26 {offsets = [0, 256], sizes = [8, 128], strides = [1, 1]} : vector<8x384xf32> to vector<8x128xf32>
      %47 = vector.extract_strided_slice %29 {offsets = [0, 256], sizes = [8, 128], strides = [1, 1]} : vector<8x384xf32> to vector<8x128xf32>
      %48 = arith.mulf %37, %47 : vector<8x128xf32>
      %49 = arith.addf %46, %48 : vector<8x128xf32>
      %50 = math.tanh %49 : vector<8x128xf32>
      %cst_21 = arith.constant 1.000000e+00 : f32
      %51 = vector.broadcast %cst_21 : f32 to vector<8x128xf32>
      %52 = arith.subf %51, %45 : vector<8x128xf32>
      %53 = arith.mulf %52, %50 : vector<8x128xf32>
      %54 = arith.mulf %45, %21 : vector<8x128xf32>
      %55 = arith.addf %53, %54 : vector<8x128xf32>
      %c1_i32_22 = arith.constant 1 : i32
      %c0_i32_23 = arith.constant 0 : i32
      %c0_i32_24 = arith.constant 0 : i32
      %c0_i32_25 = arith.constant 0 : i32
      %56 = tpu.memref_slice %arg8[%19, %c0_i32_23, %c0_i32_24, %c0_i32_25] : memref<2x4x8x384xf32, #tpu.memory_space<vmem>> -> memref<1x4x8x384xf32, #tpu.memory_space<vmem>>
      %57 = tpu.memref_squeeze %56 : memref<1x4x8x384xf32, #tpu.memory_space<vmem>> -> memref<4x8x384xf32, #tpu.memory_space<vmem>>
      %58 = arith.index_cast %c1_i32_22 : i32 to index
      %c0_26 = arith.constant 0 : index
      %c0_27 = arith.constant 0 : index
      %59 = vector.load %57[%58, %c0_26, %c0_27] : memref<4x8x384xf32, #tpu.memory_space<vmem>>, vector<1x8x384xf32>
      %60 = vector.shape_cast %59 : vector<1x8x384xf32> to vector<8x384xf32>
      %61 = arith.truncf %55 : vector<8x128xf32> to vector<8x128xbf16>
      %cst_28 = arith.constant dense<0.000000e+00> : vector<8x384xf32>
      %62 = tpu.matmul %61, %6, %cst_28 {dimension_numbers = #tpu.dot_dimension_numbers<[1], [0], [0], [1], [0, 0, 1, 1], [], []>} : vector<8x128xbf16>, vector<128x384xbf16>, vector<8x384xf32> -> vector<8x384xf32>
      %63 = arith.addf %62, %9 : vector<8x384xf32>
      %64 = vector.extract_strided_slice %60 {offsets = [0, 0], sizes = [8, 128], strides = [1, 1]} : vector<8x384xf32> to vector<8x128xf32>
      %65 = vector.extract_strided_slice %63 {offsets = [0, 0], sizes = [8, 128], strides = [1, 1]} : vector<8x384xf32> to vector<8x128xf32>
      %66 = arith.addf %64, %65 : vector<8x128xf32>
      %67 = arith.negf %66 : vector<8x128xf32>
      %68 = math.exp %67 : vector<8x128xf32>
      %cst_29 = arith.constant 1.000000e+00 : f32
      %69 = vector.broadcast %cst_29 : f32 to vector<8x128xf32>
      %70 = arith.addf %69, %68 : vector<8x128xf32>
      %71 = arith.divf %69, %70 : vector<8x128xf32>
      %72 = vector.extract_strided_slice %60 {offsets = [0, 128], sizes = [8, 128], strides = [1, 1]} : vector<8x384xf32> to vector<8x128xf32>
      %73 = vector.extract_strided_slice %63 {offsets = [0, 128], sizes = [8, 128], strides = [1, 1]} : vector<8x384xf32> to vector<8x128xf32>
      %74 = arith.addf %72, %73 : vector<8x128xf32>
      %75 = arith.negf %74 : vector<8x128xf32>
      %76 = math.exp %75 : vector<8x128xf32>
      %cst_30 = arith.constant 1.000000e+00 : f32
      %77 = vector.broadcast %cst_30 : f32 to vector<8x128xf32>
      %78 = arith.addf %77, %76 : vector<8x128xf32>
      %79 = arith.divf %77, %78 : vector<8x128xf32>
      %80 = vector.extract_strided_slice %60 {offsets = [0, 256], sizes = [8, 128], strides = [1, 1]} : vector<8x384xf32> to vector<8x128xf32>
      %81 = vector.extract_strided_slice %63 {offsets = [0, 256], sizes = [8, 128], strides = [1, 1]} : vector<8x384xf32> to vector<8x128xf32>
      %82 = arith.mulf %71, %81 : vector<8x128xf32>
      %83 = arith.addf %80, %82 : vector<8x128xf32>
      %84 = math.tanh %83 : vector<8x128xf32>
      %cst_31 = arith.constant 1.000000e+00 : f32
      %85 = vector.broadcast %cst_31 : f32 to vector<8x128xf32>
      %86 = arith.subf %85, %79 : vector<8x128xf32>
      %87 = arith.mulf %86, %84 : vector<8x128xf32>
      %88 = arith.mulf %79, %55 : vector<8x128xf32>
      %89 = arith.addf %87, %88 : vector<8x128xf32>
      %c2_i32_32 = arith.constant 2 : i32
      %c0_33 = arith.constant 0 : index
      %c0_34 = arith.constant 0 : index
      %c0_35 = arith.constant 0 : index
      %90 = vector.load %arg7[%c0_33, %c0_34, %c0_35] : memref<1x8x128xf32, #tpu.memory_space<vmem>>, vector<1x8x128xf32>
      %91 = vector.shape_cast %90 : vector<1x8x128xf32> to vector<8x128xf32>
      %92 = vector.shape_cast %89 : vector<8x128xf32> to vector<1x8x128xf32>
      tpu.vector_store %arg7[%c0_33, %c0_34, %c0_35], %92 {strides = array<i32>} : memref<1x8x128xf32, #tpu.memory_space<vmem>>, vector<1x8x128xf32>,
    } else {
    }
    return
  }
  func.func @transform_0(%arg0: i32, %arg1: i32) -> (i32, i32, i32) {
    %c2_i32 = arith.constant 2 : i32
    %0 = arith.minsi %arg1, %c2_i32 : i32
    %c0_i32 = arith.constant 0 : i32
    %c0_i32_0 = arith.constant 0 : i32
    return %0, %arg0, %c0_i32 : i32, i32, i32
  }
  func.func @transform_1(%arg0: i32, %arg1: i32) -> (i32, i32) {
    %c0_i32 = arith.constant 0 : i32
    %c0_i32_0 = arith.constant 0 : i32
    %c0_i32_1 = arith.constant 0 : i32
    return %c0_i32, %c0_i32_0 : i32, i32
  }
  func.func @transform_2(%arg0: i32, %arg1: i32) -> (i32, i32) {
    %c0_i32 = arith.constant 0 : i32
    %c0_i32_0 = arith.constant 0 : i32
    %c0_i32_1 = arith.constant 0 : i32
    return %c0_i32, %c0_i32_0 : i32, i32
  }
  func.func @transform_3(%arg0: i32, %arg1: i32) -> (i32, i32) {
    %c0_i32 = arith.constant 0 : i32
    %c0_i32_0 = arith.constant 0 : i32
    %c0_i32_1 = arith.constant 0 : i32
    return %c0_i32, %c0_i32_0 : i32, i32
  }
  func.func @transform_4(%arg0: i32, %arg1: i32) -> (i32, i32) {
    %c0_i32 = arith.constant 0 : i32
    %c0_i32_0 = arith.constant 0 : i32
    %c0_i32_1 = arith.constant 0 : i32
    return %c0_i32, %c0_i32_0 : i32, i32
  }
  func.func @transform_5(%arg0: i32, %arg1: i32) -> (i32, i32, i32) {
    %c0_i32 = arith.constant 0 : i32
    %c0_i32_0 = arith.constant 0 : i32
    %c0_i32_1 = arith.constant 0 : i32
    return %c0_i32, %arg0, %c0_i32_0 : i32, i32, i32
  }
}

</mosaic_0001>

<llo_original>
// kernel: tpu_custom_call.1
$region0: #{tpu_custom_call.1}
  #allocation0 [shape = 'u32[]', space=smem, size = 0x4, offset = 0x4, fixed_abs, tag = 'smem constant byte address 0x4 - core index']
  #allocation1 [shape = 'u32[144,128]{1,0:T(1,128)}', space=vmem, size = 0x12000, scoped, tag = 'internal scratch']
  #allocation2 [shape = 'f32[2,4,8,384]{3,2,1,0:T(8,128)}', space=vmem, size = 0x18000, scoped, tag = 'scratch operand']
  %s0 = inlined_call_operand.hbm [shape: bf16[12,8,128], index: 0, kind: input, shape index: {}]
  %s1 = inlined_call_operand.hbm [shape: bf16[128,384], index: 1, kind: input, shape index: {}]
  %s2 = inlined_call_operand.hbm [shape: bf16[128,384], index: 2, kind: input, shape index: {}]
  %s3 = inlined_call_operand.vmem [shape: f32[1,384], index: 3, kind: input, shape index: {}]
  %s4 = inlined_call_operand.vmem [shape: f32[1,384], index: 4, kind: input, shape index: {}]
  %s5 = inlined_call_operand.hbm [shape: f32[1,8,128], index: 5, kind: output, shape index: {}]
  %s6 = sld [smem:[#allocation0]]
  $region89: #{tpu_custom_call.1} parent=0
    _
  %s8 = ssub.s32 1, %s6
  %s9 = scalar_select 0, %s8, %s6
  $region1: #{tpu_custom_call.1} parent=0
    #allocation3 [shape = 'u8[16384]{0}', space=vmem, size = 0x4000, scoped, tag = 'input window, operand 0']
    #allocation4 [shape = 's32[2]{0}', space=sflag, size = 0x8, scoped, tag = 'scoped memory for tpu_custom_call.1']
    #allocation5 [shape = 's32[2]{0}', space=sflag, size = 0x8, scoped, tag = 'scoped memory for tpu_custom_call.1']
    #allocation6 [shape = 'u8[98304]{0}', space=vmem, size = 0x18000, scoped, tag = 'input window, operand 1, single buffered']
    #allocation7 [shape = 's32[1]{0}', space=sflag, size = 0x4, scoped, tag = 'scoped memory for tpu_custom_call.1']
    #allocation8 [shape = 'u8[98304]{0}', space=vmem, size = 0x18000, scoped, tag = 'input window, operand 2, single buffered']
    #allocation9 [shape = 'u8[4096]{0}', space=vmem, size = 0x1000, scoped, tag = 'output window, operand 0, single buffered']
    %10 = vsyncpa [#allocation4], 0
    %s11 = scalar_lea.sflag [#allocation4], 1
    %12 = vsyncpa %s11, 0
    %13 = vsyncpa [#allocation7], 0
    %14 = vsyncpa [#allocation5], 0
    loop: start=0, step=1, limit=6
    $region2: #{tpu_custom_call.1} parent=1 // loop_pre_header
      _
    $region3: #{tpu_custom_call.1} parent=1 // loop_header
      %s16 = sphi 0, %s20
      %p17 = scmp.ge.s32.totalorder %s16, 6
      %s23 = sphi 0, %s35
      %s24 = sphi 0, %s31
      %s25 = sphi 0, %s23
      %s26 = sphi 0, %s24
      %s27 = sphi 0, %s25
      %s28 = sphi 0, %s26
      %s44 = sphi 0, %s46
      %s47 = sphi 0, %s44
      %s48 = sphi 0, %s47
      %s64 = sphi 0, %s48
      %s68 = sphi 0, %s68
      %s70 = sphi 0, %s68
      %s71 = sphi 0, %s70
      %s85 = sphi 0, %s71
      %s89 = sphi 0, %s89
      %s91 = sphi 0, %s89
      %s92 = sphi 0, %s91
      %s106 = sphi 0, %s92
      %s110 = sphi 0, %s110
      %s112 = sphi 0, %s110
      %s113 = sphi 0, %s112
      %s127 = sphi 0, %s113
      %s131 = sphi 0, %s131
      %s133 = sphi 0, %s131
      %s134 = sphi 0, %s133
      %s148 = sphi 0, %s134
      %s154 = sphi 0, %s156
      %s157 = sphi 0, %s154
      %s158 = sphi 0, %s157
      %s174 = sphi 0, %s158
    $region4: #{tpu_custom_call.1} parent=1 // loop_header_branch
      %19 = sbr.rel (%p17) target = $region8
    $region5: #{tpu_custom_call.1} parent=1 // loop_body
      %s21 = ssub.s32 %s16, 1
      %s22 = ssub.s32 %s16, 2
      %s29 = sadd.s32 1, %s24
      %p30 = scmp.ge.s32.totalorder %s29, 4
      %s31 = scalar_select %p30, 0, %s29
      %s32 = sadd.s32 1, %s23
      %s33 = scalar_select %p30, %s32, %s23
      %p34 = scmp.ge.s32.totalorder %s33, 1
      %s35 = scalar_select %p34, 0, %s33
      %p36 = scmp.lt.s32.totalorder %s24, 2
      %s37 = scalar_select %p36, %s24, 2
      %p38 = scmp.lt.s32.totalorder %s31, 2
      %s39 = scalar_select %p38, %s31, 2
      %s40 = ssub.s32 %s37, %s39
      %s41 = ssub.s32 %s23, %s35
      %s42 = sor.u32 %s40, %s41
      %p43 = scmp.eq.s32.totalorder %s42, 0
      %s45 = sadd.s32 %s44, 1
      %s46 = scalar_select %p43, %s44, %s45
      %p49 = pneg %p43
      %p50 = scmp.eq.s32.totalorder %s16, 3
      %p51 = por %p49, %p50
      %p52 = scmp.ne.s32.totalorder %s44, %s47
      %p53 = scmp.eq.s32.totalorder %s16, 0
      %p54 = por %p52, %p53
      %p55 = scmp.ne.s32.totalorder %s44, %s47
      %p56 = scmp.eq.s32.totalorder %s21, 3
      %p57 = por %p55, %p56
      %p58 = scmp.ne.s32.totalorder %s47, %s48
      %p59 = scmp.eq.s32.totalorder %s21, 0
      %p60 = por %p58, %p59
      %p61 = scmp.ne.s32.totalorder %s47, %s48
      %p62 = scmp.eq.s32.totalorder %s22, 3
      %p63 = por %p61, %p62
      %p65 = scmp.ne.s32.totalorder %s48, %s64
      %p66 = scmp.eq.s32.totalorder %s22, 0
      %p67 = por %p65, %p66
      %s69 = sadd.s32 %s68, 1
      %p72 = scmp.eq.s32.totalorder %s16, 3
      %p73 = scmp.ne.s32.totalorder %s68, %s70
      %p74 = scmp.eq.s32.totalorder %s16, 0
      %p75 = por %p73, %p74
      %p76 = scmp.ne.s32.totalorder %s68, %s70
      %p77 = scmp.eq.s32.totalorder %s21, 3
      %p78 = por %p76, %p77
      %p79 = scmp.ne.s32.totalorder %s70, %s71
      %p80 = scmp.eq.s32.totalorder %s21, 0
      %p81 = por %p79, %p80
      %p82 = scmp.ne.s32.totalorder %s70, %s71
      %p83 = scmp.eq.s32.totalorder %s22, 3
      %p84 = por %p82, %p83
      %p86 = scmp.ne.s32.totalorder %s71, %s85
      %p87 = scmp.eq.s32.totalorder %s22, 0
      %p88 = por %p86, %p87
      %s90 = sadd.s32 %s89, 1
      %p93 = scmp.eq.s32.totalorder %s16, 3
      %p94 = scmp.ne.s32.totalorder %s89, %s91
      %p95 = scmp.eq.s32.totalorder %s16, 0
      %p96 = por %p94, %p95
      %p97 = scmp.ne.s32.totalorder %s89, %s91
      %p98 = scmp.eq.s32.totalorder %s21, 3
      %p99 = por %p97, %p98
      %p100 = scmp.ne.s32.totalorder %s91, %s92
      %p101 = scmp.eq.s32.totalorder %s21, 0
      %p102 = por %p100, %p101
      %p103 = scmp.ne.s32.totalorder %s91, %s92
      %p104 = scmp.eq.s32.totalorder %s22, 3
      %p105 = por %p103, %p104
      %p107 = scmp.ne.s32.totalorder %s92, %s106
      %p108 = scmp.eq.s32.totalorder %s22, 0
      %p109 = por %p107, %p108
      %s111 = sadd.s32 %s110, 1
      %p114 = scmp.eq.s32.totalorder %s16, 3
      %p115 = scmp.ne.s32.totalorder %s110, %s112
      %p116 = scmp.eq.s32.totalorder %s16, 0
      %p117 = por %p115, %p116
      %p118 = scmp.ne.s32.totalorder %s110, %s112
      %p119 = scmp.eq.s32.totalorder %s21, 3
      %p120 = por %p118, %p119
      %p121 = scmp.ne.s32.totalorder %s112, %s113
      %p122 = scmp.eq.s32.totalorder %s21, 0
      %p123 = por %p121, %p122
      %p124 = scmp.ne.s32.totalorder %s112, %s113
      %p125 = scmp.eq.s32.totalorder %s22, 3
      %p126 = por %p124, %p125
      %p128 = scmp.ne.s32.totalorder %s113, %s127
      %p129 = scmp.eq.s32.totalorder %s22, 0
      %p130 = por %p128, %p129
      %s132 = sadd.s32 %s131, 1
      %p135 = scmp.eq.s32.totalorder %s16, 3
      %p136 = scmp.ne.s32.totalorder %s131, %s133
      %p137 = scmp.eq.s32.totalorder %s16, 0
      %p138 = por %p136, %p137
      %p139 = scmp.ne.s32.totalorder %s131, %s133
      %p140 = scmp.eq.s32.totalorder %s21, 3
      %p141 = por %p139, %p140
      %p142 = scmp.ne.s32.totalorder %s133, %s134
      %p143 = scmp.eq.s32.totalorder %s21, 0
      %p144 = por %p142, %p143
      %p145 = scmp.ne.s32.totalorder %s133, %s134
      %p146 = scmp.eq.s32.totalorder %s22, 3
      %p147 = por %p145, %p146
      %p149 = scmp.ne.s32.totalorder %s134, %s148
      %p150 = scmp.eq.s32.totalorder %s22, 0
      %p151 = por %p149, %p150
      %s152 = ssub.s32 %s23, %s35
      %p153 = scmp.eq.s32.totalorder %s152, 0
      %s155 = sadd.s32 %s154, 1
      %s156 = scalar_select %p153, %s154, %s155
      %p159 = pneg %p153
      %p160 = scmp.eq.s32.totalorder %s16, 3
      %p161 = por %p159, %p160
      %p162 = scmp.ne.s32.totalorder %s154, %s157
      %p163 = scmp.eq.s32.totalorder %s16, 0
      %p164 = por %p162, %p163
      %p165 = scmp.ne.s32.totalorder %s154, %s157
      %p166 = scmp.eq.s32.totalorder %s21, 3
      %p167 = por %p165, %p166
      %p168 = scmp.ne.s32.totalorder %s157, %s158
      %p169 = scmp.eq.s32.totalorder %s21, 0
      %p170 = por %p168, %p169
      %p171 = scmp.ne.s32.totalorder %s157, %s158
      %p172 = scmp.eq.s32.totalorder %s22, 3
      %p173 = por %p171, %p172
      %p175 = scmp.ne.s32.totalorder %s158, %s174
      %p176 = scmp.eq.s32.totalorder %s22, 0
      %p177 = por %p175, %p176
      %p178 = scmp.le.s32.totalorder 1, %s16
      %p179 = scmp.lt.s32.totalorder %s16, 5
      %p180 = pnand %p178, %p179
      %p181 = pneg %p180
      // Predicated region
      $region9: #{tpu_custom_call.1} parent=5 // pred_check
        _
      $region10: #{tpu_custom_call.1} parent=5 // pred_check_branch
        %183 = sbr.rel (%p180) target = $region12
      $region11: #{tpu_custom_call.1} parent=5 // pred_region
        %s184 = ssub.s32 %s16, 1
        // Predicated region
        $region13: #{tpu_custom_call.1} parent=11 // pred_check
          %p185 = pneg %p81
        $region14: #{tpu_custom_call.1} parent=11 // pred_check_branch
          %187 = sbr.rel (%p185) target = $region16
        $region15: #{tpu_custom_call.1} parent=11 // pred_region
          %s189 = ssub.s32 3072, 3072
          %190 = vsyncadd [#allocation7], %s189
          %s191 = sshll.u32 [#allocation6], 4
          %s192 = int_to_ptr.vmem [resolvable:$true] %s191
          %197 = dma.hbm_to_vmem [thread:$0]  %s1, 3072, %s192, [#allocation7], 192, 192, 12
        $region16: #{tpu_custom_call.1} parent=11 // pred_fallthru
          _
        // Predicated region
        $region17: #{tpu_custom_call.1} parent=11 // pred_check
          %p198 = pneg %p102
        $region18: #{tpu_custom_call.1} parent=11 // pred_check_branch
          %200 = sbr.rel (%p198) target = $region20
        $region19: #{tpu_custom_call.1} parent=11 // pred_region
          %s202 = ssub.s32 3072, 3072
          %203 = vsyncadd [#allocation7], %s202
          %s204 = sshll.u32 [#allocation8], 4
          %s205 = int_to_ptr.vmem [resolvable:$true] %s204
          %210 = dma.hbm_to_vmem [thread:$0]  %s2, 3072, %s205, [#allocation7], 192, 192, 12
        $region20: #{tpu_custom_call.1} parent=11 // pred_fallthru
          _
        // Predicated region
        $region21: #{tpu_custom_call.1} parent=11 // pred_check
          %p211 = pneg %p123
        $region22: #{tpu_custom_call.1} parent=11 // pred_check_branch
          %213 = sbr.rel (%p211) target = $region24
        $region23: #{tpu_custom_call.1} parent=11 // pred_region
          _
        $region24: #{tpu_custom_call.1} parent=11 // pred_fallthru
          _
        // Predicated region
        $region25: #{tpu_custom_call.1} parent=11 // pred_check
          %p214 = pneg %p144
        $region26: #{tpu_custom_call.1} parent=11 // pred_check_branch
          %216 = sbr.rel (%p214) target = $region28
        $region27: #{tpu_custom_call.1} parent=11 // pred_region
          _
        $region28: #{tpu_custom_call.1} parent=11 // pred_fallthru
          _
      $region12: #{tpu_custom_call.1} parent=5 // pred_fallthru
        _
      %p217 = scmp.lt.s32.totalorder %s16, 4
      // Predicated region
      $region29: #{tpu_custom_call.1} parent=5 // pred_check
        %p218 = pneg %p217
      $region30: #{tpu_custom_call.1} parent=5 // pred_check_branch
        %220 = sbr.rel (%p218) target = $region32
      $region31: #{tpu_custom_call.1} parent=5 // pred_region
        // Predicated region
        $region33: #{tpu_custom_call.1} parent=31 // pred_check
          %p221 = pneg %p54
        $region34: #{tpu_custom_call.1} parent=31 // pred_check_branch
          %223 = sbr.rel (%p221) target = $region36
        $region35: #{tpu_custom_call.1} parent=31 // pred_region
          %s224 = sand.u32 %s44, 1
          %s225 = scalar_lea.sflag [#allocation4], %s224
          %s226 = sand.u32 %s44, 1
          %s227 = smul.addr %s226, 16
          %s228 = scalar_lea.vmem [#allocation3], %s227
          %p229 = scmp.lt.s32.totalorder %s24, 2
          %s230 = scalar_select %p229, %s24, 2
          %s231 = smul.u32 4, %s230
          %s233 = ssub.s32 256, 256
          %234 = vsyncadd %s225, %s233
          %s235 = sadd.s32 %s23, %s231
          %s236 = smul.addr %s235, 64
          %s237 = scalar_lea.hbm %s0, %s236
          %s238 = sshll.u32 %s228, 4
          %s239 = int_to_ptr.vmem [resolvable:$true] %s238
          %244 = dma.hbm_to_vmem [thread:$0]  %s237, 256, %s239, %s225, 64, 64, 4
        $region36: #{tpu_custom_call.1} parent=31 // pred_fallthru
          _
      $region32: #{tpu_custom_call.1} parent=5 // pred_fallthru
        _
      %p245 = scmp.le.s32.totalorder 1, %s16
      %p246 = scmp.lt.s32.totalorder %s16, 5
      %p247 = pnand %p245, %p246
      %p248 = pneg %p247
      // Predicated region
      $region37: #{tpu_custom_call.1} parent=5 // pred_check
        _
      $region38: #{tpu_custom_call.1} parent=5 // pred_check_branch
        %250 = sbr.rel (%p247) target = $region40
      $region39: #{tpu_custom_call.1} parent=5 // pred_region
        %s251 = ssub.s32 %s16, 1
        %s252 = sand.u32 %s47, 1
        %s253 = scalar_lea.sflag [#allocation4], %s252
        %s254 = sand.u32 %s47, 1
        %s255 = smul.addr %s254, 16
        %s256 = scalar_lea.vmem [#allocation3], %s255
        // Predicated region
        $region41: #{tpu_custom_call.1} parent=39 // pred_check
          %p257 = pneg %p60
        $region42: #{tpu_custom_call.1} parent=39 // pred_check_branch
          %259 = sbr.rel (%p257) target = $region44
        $region43: #{tpu_custom_call.1} parent=39 // pred_region
          %260 = dma.done %s253, 256
        $region44: #{tpu_custom_call.1} parent=39 // pred_fallthru
          _
        // Predicated region
        $region45: #{tpu_custom_call.1} parent=39 // pred_check
          %p261 = pneg %p81
        $region46: #{tpu_custom_call.1} parent=39 // pred_check_branch
          %263 = sbr.rel (%p261) target = $region48
        $region47: #{tpu_custom_call.1} parent=39 // pred_region
          %264 = dma.done [#allocation7], 3072
        $region48: #{tpu_custom_call.1} parent=39 // pred_fallthru
          _
        // Predicated region
        $region49: #{tpu_custom_call.1} parent=39 // pred_check
          %p265 = pneg %p102
        $region50: #{tpu_custom_call.1} parent=39 // pred_check_branch
          %267 = sbr.rel (%p265) target = $region52
        $region51: #{tpu_custom_call.1} parent=39 // pred_region
          %268 = dma.done [#allocation7], 3072
        $region52: #{tpu_custom_call.1} parent=39 // pred_fallthru
          _
        %s269 = sand.u32 %s47, 1
        %s270 = scalar_lea.sflag [#allocation4], %s269
        %s271 = sand.u32 %s47, 1
        %s272 = smul.addr %s271, 16
        %s273 = scalar_lea.vmem [#allocation3], %s272
        %p274 = pneg %p60
        %p275 = pneg %p57
        %p276 = pneg %p81
        %p277 = pneg %p78
        %p278 = pneg %p102
        %p279 = pneg %p99
        %p280 = pneg %p123
        %p281 = pneg %p120
        %p282 = pneg %p144
        %p283 = pneg %p141
        %p284 = pneg %p170
        %p285 = pneg %p167
        %p286 = scmp.lt.s32.totalorder %s26, 2
        %s287 = scalar_select %p286, %s26, 2
        %s288 = smul.u32 4, %s287
        %p290 = scmp.eq.s32.totalorder %s26, 0
        // Predicated region
        $region53: #{tpu_custom_call.1} parent=39 // pred_check
          %p291 = pneg %p290
        $region54: #{tpu_custom_call.1} parent=39 // pred_check_branch
          %293 = sbr.rel (%p291) target = $region56
        $region55: #{tpu_custom_call.1} parent=39 // pred_region
          %294 = vst [vmem:[#allocation9] sm:$0xff] 0.0
        $region56: #{tpu_custom_call.1} parent=39 // pred_fallthru
          _
        %p295 = scmp.lt.s32.totalorder %s26, 3
        // Predicated region
        $region57: #{tpu_custom_call.1} parent=39 // pred_check
          %p296 = pneg %p295
        $region58: #{tpu_custom_call.1} parent=39 // pred_check_branch
          %298 = sbr.rel (%p296) target = $region60
        $region59: #{tpu_custom_call.1} parent=39 // pred_region
          %v299 = vld [vmem:[%s256] sm:$0xf]
          %v300 = vld [vmem:[%s256 + $0x4] sm:$0xf]
          %v301 = vld [vmem:[%s256 + $0x8] sm:$0xf]
          %v302 = vld [vmem:[%s256 + $0xc] sm:$0xf]
          %v303 = vld [vmem:[#allocation6] sm:$0xff]
          %v304 = vld [vmem:[#allocation6 + $0x8] sm:$0xf]
          %v305 = vld [vmem:[#allocation6 + $0xc] sm:$0xff]
          %v306 = vld [vmem:[#allocation6 + $0x14] sm:$0xf]
          %v307 = vld [vmem:[#allocation6 + $0x18] sm:$0xff]
          %v308 = vld [vmem:[#allocation6 + $0x20] sm:$0xf]
          %v309 = vld [vmem:[#allocation6 + $0x24] sm:$0xff]
          %v310 = vld [vmem:[#allocation6 + $0x2c] sm:$0xf]
          %v311 = vld [vmem:[#allocation6 + $0x30] sm:$0xff]
          %v312 = vld [vmem:[#allocation6 + $0x38] sm:$0xf]
          %v313 = vld [vmem:[#allocation6 + $0x3c] sm:$0xff]
          %v314 = vld [vmem:[#allocation6 + $0x44] sm:$0xf]
          %v315 = vld [vmem:[#allocation6 + $0x48] sm:$0xff]
          %v316 = vld [vmem:[#allocation6 + $0x50] sm:$0xf]
          %v317 = vld [vmem:[#allocation6 + $0x54] sm:$0xff]
          %v318 = vld [vmem:[#allocation6 + $0x5c] sm:$0xf]
          %v319 = vld [vmem:[#allocation6 + $0x60] sm:$0xff]
          %v320 = vld [vmem:[#allocation6 + $0x68] sm:$0xf]
          %v321 = vld [vmem:[#allocation6 + $0x6c] sm:$0xff]
          %v322 = vld [vmem:[#allocation6 + $0x74] sm:$0xf]
          %v323 = vld [vmem:[#allocation6 + $0x78] sm:$0xff]
          %v324 = vld [vmem:[#allocation6 + $0x80] sm:$0xf]
          %v325 = vld [vmem:[#allocation6 + $0x84] sm:$0xff]
          %v326 = vld [vmem:[#allocation6 + $0x8c] sm:$0xf]
          %v327 = vld [vmem:[#allocation6 + $0x90] sm:$0xff]
          %v328 = vld [vmem:[#allocation6 + $0x98] sm:$0xf]
          %v329 = vld [vmem:[#allocation6 + $0x9c] sm:$0xff]
          %v330 = vld [vmem:[#allocation6 + $0xa4] sm:$0xf]
          %v331 = vld [vmem:[#allocation6 + $0xa8] sm:$0xff]
          %v332 = vld [vmem:[#allocation6 + $0xb0] sm:$0xf]
          %v333 = vld [vmem:[#allocation6 + $0xb4] sm:$0xff]
          %v334 = vld [vmem:[#allocation6 + $0xbc] sm:$0xf]
          %v335 = vld [vmem:[%s3] sm:$0x7]
          %v337 = vlaneseq
          %v338 = vshrl.u32 %v337, 7
          %v339 = vsub.s32 0, %v338
          %v340 = vrot.slane %v335, %v339
          %v341 = vlaneseq
          %v342 = vshrl.u32 %v341, 7
          %v343 = vsub.s32 1, %v342
          %v344 = vrot.slane %v335, %v343
          %v345 = vlaneseq
          %v346 = vshrl.u32 %v345, 7
          %v347 = vsub.s32 2, %v346
          %v348 = vrot.slane %v335, %v347
          %v356 = vunpack.c.l.b16 %v299
          %v357 = vunpack.c.l.b16 %v300
          %v358 = vunpack.c.l.b16 %v301
          %v359 = vunpack.c.l.b16 %v302
          %v360 = vpack.c.b16 %v357, %v356
          %v361 = vpack.c.b16 %v359, %v358
          %v396 = vunpack.c.l.b16 %v303
          %v397 = vunpack.c.h.b16 %v303
          %v398 = vunpack.c.l.b16 %v304
          %v399 = vunpack.c.l.b16 %v305
          %v400 = vunpack.c.h.b16 %v305
          %v401 = vunpack.c.l.b16 %v306
          %v402 = vunpack.c.l.b16 %v307
          %v403 = vunpack.c.h.b16 %v307
          %v404 = vunpack.c.l.b16 %v308
          %v405 = vunpack.c.l.b16 %v309
          %v406 = vunpack.c.h.b16 %v309
          %v407 = vunpack.c.l.b16 %v310
          %v408 = vunpack.c.l.b16 %v311
          %v409 = vunpack.c.h.b16 %v311
          %v410 = vunpack.c.l.b16 %v312
          %v411 = vunpack.c.l.b16 %v313
          %v412 = vunpack.c.h.b16 %v313
          %v413 = vunpack.c.l.b16 %v314
          %v414 = vunpack.c.l.b16 %v315
          %v415 = vunpack.c.h.b16 %v315
          %v416 = vunpack.c.l.b16 %v316
          %v417 = vunpack.c.l.b16 %v317
          %v418 = vunpack.c.h.b16 %v317
          %v419 = vunpack.c.l.b16 %v318
          %v420 = vunpack.c.l.b16 %v319
          %v421 = vunpack.c.h.b16 %v319
          %v422 = vunpack.c.l.b16 %v320
          %v423 = vunpack.c.l.b16 %v321
          %v424 = vunpack.c.h.b16 %v321
          %v425 = vunpack.c.l.b16 %v322
          %v426 = vunpack.c.l.b16 %v323
          %v427 = vunpack.c.h.b16 %v323
          %v428 = vunpack.c.l.b16 %v324
          %v429 = vunpack.c.l.b16 %v325
          %v430 = vunpack.c.h.b16 %v325
          %v431 = vunpack.c.l.b16 %v326
          %v432 = vunpack.c.l.b16 %v327
          %v433 = vunpack.c.h.b16 %v327
          %v434 = vunpack.c.l.b16 %v328
          %v435 = vunpack.c.l.b16 %v329
          %v436 = vunpack.c.h.b16 %v329
          %v437 = vunpack.c.l.b16 %v330
          %v438 = vunpack.c.l.b16 %v331
          %v439 = vunpack.c.h.b16 %v331
          %v440 = vunpack.c.l.b16 %v332
          %v441 = vunpack.c.l.b16 %v333
          %v442 = vunpack.c.h.b16 %v333
          %v443 = vunpack.c.l.b16 %v334
          %v444 = vpack.c.b16 %v399, %v396
          %v445 = vpack.c.b16 %v400, %v397
          %v446 = vpack.c.b16 %v401, %v398
          %v447 = vpack.c.b16 %v405, %v402
          %v448 = vpack.c.b16 %v406, %v403
          %v449 = vpack.c.b16 %v407, %v404
          %v450 = vpack.c.b16 %v411, %v408
          %v451 = vpack.c.b16 %v412, %v409
          %v452 = vpack.c.b16 %v413, %v410
          %v453 = vpack.c.b16 %v417, %v414
          %v454 = vpack.c.b16 %v418, %v415
          %v455 = vpack.c.b16 %v419, %v416
          %v456 = vpack.c.b16 %v423, %v420
          %v457 = vpack.c.b16 %v424, %v421
          %v458 = vpack.c.b16 %v425, %v422
          %v459 = vpack.c.b16 %v429, %v426
          %v460 = vpack.c.b16 %v430, %v427
          %v461 = vpack.c.b16 %v431, %v428
          %v462 = vpack.c.b16 %v435, %v432
          %v463 = vpack.c.b16 %v436, %v433
          %v464 = vpack.c.b16 %v437, %v434
          %v465 = vpack.c.b16 %v441, %v438
          %v466 = vpack.c.b16 %v442, %v439
          %v467 = vpack.c.b16 %v443, %v440
          %492 = vmatprep.subr.bf16.mxu0 %v445
          %493 = vmatpush1.bf16.msra.mxu0 %v444
          %494 = vmatprep.subr.bf16.mxu0 %v448
          %495 = vmatpush1.bf16.msra.mxu0 %v447
          %496 = vmatprep.subr.bf16.mxu0 %v451
          %497 = vmatpush1.bf16.msra.mxu0 %v450
          %498 = vmatprep.subr.bf16.mxu0 %v454
          %499 = vmatpush1.bf16.msra.mxu0 %v453
          %500 = vmatprep.subr.bf16.mxu0 %v457
          %501 = vmatpush1.bf16.msra.mxu0 %v456
          %502 = vmatprep.subr.bf16.mxu0 %v460
          %503 = vmatpush1.bf16.msra.mxu0 %v459
          %504 = vmatprep.subr.bf16.mxu0 %v463
          %505 = vmatpush1.bf16.msra.mxu0 %v462
          %506 = vmatprep.subr.bf16.mxu0 %v466
          %507 = vmatpush1.bf16.msra.mxu0 %v465
          %508 = vmatprep.subr.bf16.mxu0 0
          %509 = vmatpush1.bf16.msra.mxu0 0
          %510 = vmatprep.subr.bf16.mxu0 0
          %511 = vmatpush1.bf16.msra.mxu0 0
          %512 = vmatprep.subr.bf16.mxu0 0
          %513 = vmatpush1.bf16.msra.mxu0 0
          %514 = vmatprep.subr.bf16.mxu0 0
          %515 = vmatpush1.bf16.msra.mxu0 0
          %516 = vmatprep.subr.bf16.mxu0 0
          %517 = vmatpush1.bf16.msra.mxu0 0
          %518 = vmatprep.subr.bf16.mxu0 0
          %519 = vmatpush1.bf16.msra.mxu0 0
          %520 = vmatprep.subr.bf16.mxu0 0
          %521 = vmatpush1.bf16.msra.mxu0 0
          %522 = vmatprep.subr.bf16.mxu0 0
          %523 = vmatpush1.bf16.msra.mxu0 0
          %524 = vmatprep.mubr.bf16.mxu0 0
          %525 = vmatmul.mubr.bf16.gmra.mrb[0].mxu0 %v360
          %v526 = vpop.f32.mrb[0].mxu0
          %v527 = vadd.f32 %v340, %v526
          %v528 = vpop.f32.mrb[0].mxu0
          %v529 = vadd.f32 %v344, %v528
          %v530 = vpop.f32.mrb[0].mxu0
          %v531 = vadd.f32 %v340, %v530
          %v532 = vpop.f32.mrb[0].mxu0
          %v533 = vadd.f32 %v344, %v532
          %534 = vmatprep.mubr.bf16.mxu0 0
          %535 = vmatmul.mubr.bf16.gmra.mrb[0].mxu0 %v361
          %v536 = vpop.f32.mrb[0].mxu0
          %v537 = vadd.f32 %v340, %v536
          %v538 = vpop.f32.mrb[0].mxu0
          %v539 = vadd.f32 %v344, %v538
          %v540 = vpop.f32.mrb[0].mxu0
          %v541 = vadd.f32 %v340, %v540
          %v542 = vpop.f32.mrb[0].mxu0
          %v543 = vadd.f32 %v344, %v542
          %544 = vdwg.mxu0
          %545 = vmatprep.subr.bf16.mxu0 0
          %546 = vmatpush1.bf16.msra.mxu0 %v446
          %547 = vmatprep.subr.bf16.mxu0 0
          %548 = vmatpush1.bf16.msra.mxu0 %v449
          %549 = vmatprep.subr.bf16.mxu0 0
          %550 = vmatpush1.bf16.msra.mxu0 %v452
          %551 = vmatprep.subr.bf16.mxu0 0
          %552 = vmatpush1.bf16.msra.mxu0 %v455
          %553 = vmatprep.subr.bf16.mxu0 0
          %554 = vmatpush1.bf16.msra.mxu0 %v458
          %555 = vmatprep.subr.bf16.mxu0 0
          %556 = vmatpush1.bf16.msra.mxu0 %v461
          %557 = vmatprep.subr.bf16.mxu0 0
          %558 = vmatpush1.bf16.msra.mxu0 %v464
          %559 = vmatprep.subr.bf16.mxu0 0
          %560 = vmatpush1.bf16.msra.mxu0 %v467
          %561 = vmatprep.subr.bf16.mxu0 0
          %562 = vmatpush1.bf16.msra.mxu0 0
          %563 = vmatprep.subr.bf16.mxu0 0
          %564 = vmatpush1.bf16.msra.mxu0 0
          %565 = vmatprep.subr.bf16.mxu0 0
          %566 = vmatpush1.bf16.msra.mxu0 0
          %567 = vmatprep.subr.bf16.mxu0 0
          %568 = vmatpush1.bf16.msra.mxu0 0
          %569 = vmatprep.subr.bf16.mxu0 0
          %570 = vmatpush1.bf16.msra.mxu0 0
          %571 = vmatprep.subr.bf16.mxu0 0
          %572 = vmatpush1.bf16.msra.mxu0 0
          %573 = vmatprep.subr.bf16.mxu0 0
          %574 = vmatpush1.bf16.msra.mxu0 0
          %575 = vmatprep.subr.bf16.mxu0 0
          %576 = vmatpush1.bf16.msra.mxu0 0
          %577 = vmatprep.mubr.bf16.mxu0 0
          %578 = vmatmul.mubr.bf16.gmra.mrb[0].mxu0 %v360
          %v579 = vpop.f32.mrb[0].mxu0
          %v580 = vadd.f32 %v348, %v579
          %v581 = vpop.f32.mrb[0].mxu0
          %v582 = vpop.f32.mrb[0].mxu0
          %v583 = vadd.f32 %v348, %v582
          %v584 = vpop.f32.mrb[0].mxu0
          %585 = vmatprep.mubr.bf16.mxu0 0
          %586 = vmatmul.mubr.bf16.gmra.mrb[0].mxu0 %v361
          %v587 = vpop.f32.mrb[0].mxu0
          %v588 = vadd.f32 %v348, %v587
          %v589 = vpop.f32.mrb[0].mxu0
          %v590 = vpop.f32.mrb[0].mxu0
          %v591 = vadd.f32 %v348, %v590
          %v592 = vpop.f32.mrb[0].mxu0
          %593 = vdwg.mxu0
          %p594 = scmp.lt.s32.totalorder %s26, 0
          %s595 = ssub.s32 0, %s26
          %s596 = scalar_select %p594, %s595, %s26
          %s597 = sand.u32 %s596, 1
          %s598 = ssub.s32 0, %s597
          %s599 = scalar_select %p594, %s598, %s597
          %p600 = scmp.eq.s32.totalorder %s599, 0
          // Predicated region
          $region61: #{tpu_custom_call.1} parent=59 // pred_check
            %p601 = pneg %p600
          $region62: #{tpu_custom_call.1} parent=59 // pred_check_branch
            %603 = sbr.rel (%p601) target = $region64
          $region63: #{tpu_custom_call.1} parent=59 // pred_region
            %604 = vst [vmem:[#allocation2] sm:$0xff] %v527
            %605 = vst [vmem:[#allocation2 + $0x8] sm:$0xff] %v529
            %606 = vst [vmem:[#allocation2 + $0x10] sm:$0xff] %v580
            %607 = vst [vmem:[#allocation2 + $0x18] sm:$0xff] %v531
            %608 = vst [vmem:[#allocation2 + $0x20] sm:$0xff] %v533
            %609 = vst [vmem:[#allocation2 + $0x28] sm:$0xff] %v583
            %610 = vst [vmem:[#allocation2 + $0x30] sm:$0xff] %v537
            %611 = vst [vmem:[#allocation2 + $0x38] sm:$0xff] %v539
            %612 = vst [vmem:[#allocation2 + $0x40] sm:$0xff] %v588
            %613 = vst [vmem:[#allocation2 + $0x48] sm:$0xff] %v541
            %614 = vst [vmem:[#allocation2 + $0x50] sm:$0xff] %v543
            %615 = vst [vmem:[#allocation2 + $0x58] sm:$0xff] %v591
          $region64: #{tpu_custom_call.1} parent=59 // pred_fallthru
            _
          %p616 = scmp.eq.s32.totalorder %s599, 1
          // Predicated region
          $region65: #{tpu_custom_call.1} parent=59 // pred_check
            %p617 = pneg %p616
          $region66: #{tpu_custom_call.1} parent=59 // pred_check_branch
            %619 = sbr.rel (%p617) target = $region68
          $region67: #{tpu_custom_call.1} parent=59 // pred_region
            %s620 = scalar_lea.vmem [#allocation2], 96
            %621 = vst [vmem:[%s620] sm:$0xff] %v527
            %622 = vst [vmem:[%s620 + $0x8] sm:$0xff] %v529
            %623 = vst [vmem:[%s620 + $0x10] sm:$0xff] %v580
            %624 = vst [vmem:[%s620 + $0x18] sm:$0xff] %v531
            %625 = vst [vmem:[%s620 + $0x20] sm:$0xff] %v533
            %626 = vst [vmem:[%s620 + $0x28] sm:$0xff] %v583
            %627 = vst [vmem:[%s620 + $0x30] sm:$0xff] %v537
            %628 = vst [vmem:[%s620 + $0x38] sm:$0xff] %v539
            %629 = vst [vmem:[%s620 + $0x40] sm:$0xff] %v588
            %630 = vst [vmem:[%s620 + $0x48] sm:$0xff] %v541
            %631 = vst [vmem:[%s620 + $0x50] sm:$0xff] %v543
            %632 = vst [vmem:[%s620 + $0x58] sm:$0xff] %v591
          $region68: #{tpu_custom_call.1} parent=59 // pred_fallthru
            _
        $region60: #{tpu_custom_call.1} parent=39 // pred_fallthru
          _
        %v633 = vld [vmem:[#allocation8] sm:$0xff]
        %v634 = vld [vmem:[#allocation8 + $0x8] sm:$0xf]
        %v635 = vld [vmem:[#allocation8 + $0xc] sm:$0xff]
        %v636 = vld [vmem:[#allocation8 + $0x14] sm:$0xf]
        %v637 = vld [vmem:[#allocation8 + $0x18] sm:$0xff]
        %v638 = vld [vmem:[#allocation8 + $0x20] sm:$0xf]
        %v639 = vld [vmem:[#allocation8 + $0x24] sm:$0xff]
        %v640 = vld [vmem:[#allocation8 + $0x2c] sm:$0xf]
        %v641 = vld [vmem:[#allocation8 + $0x30] sm:$0xff]
        %v642 = vld [vmem:[#allocation8 + $0x38] sm:$0xf]
        %v643 = vld [vmem:[#allocation8 + $0x3c] sm:$0xff]
        %v644 = vld [vmem:[#allocation8 + $0x44] sm:$0xf]
        %v645 = vld [vmem:[#allocation8 + $0x48] sm:$0xff]
        %v646 = vld [vmem:[#allocation8 + $0x50] sm:$0xf]
        %v647 = vld [vmem:[#allocation8 + $0x54] sm:$0xff]
        %v648 = vld [vmem:[#allocation8 + $0x5c] sm:$0xf]
        %v649 = vld [vmem:[#allocation8 + $0x60] sm:$0xff]
        %v650 = vld [vmem:[#allocation8 + $0x68] sm:$0xf]
        %v651 = vld [vmem:[#allocation8 + $0x6c] sm:$0xff]
        %v652 = vld [vmem:[#allocation8 + $0x74] sm:$0xf]
        %v653 = vld [vmem:[#allocation8 + $0x78] sm:$0xff]
        %v654 = vld [vmem:[#allocation8 + $0x80] sm:$0xf]
        %v655 = vld [vmem:[#allocation8 + $0x84] sm:$0xff]
        %v656 = vld [vmem:[#allocation8 + $0x8c] sm:$0xf]
        %v657 = vld [vmem:[#allocation8 + $0x90] sm:$0xff]
        %v658 = vld [vmem:[#allocation8 + $0x98] sm:$0xf]
        %v659 = vld [vmem:[#allocation8 + $0x9c] sm:$0xff]
        %v660 = vld [vmem:[#allocation8 + $0xa4] sm:$0xf]
        %v661 = vld [vmem:[#allocation8 + $0xa8] sm:$0xff]
        %v662 = vld [vmem:[#allocation8 + $0xb0] sm:$0xf]
        %v663 = vld [vmem:[#allocation8 + $0xb4] sm:$0xff]
        %v664 = vld [vmem:[#allocation8 + $0xbc] sm:$0xf]
        %v665 = vld [vmem:[%s4] sm:$0x7]
        %v667 = vlaneseq
        %v668 = vshrl.u32 %v667, 7
        %v669 = vsub.s32 0, %v668
        %v670 = vrot.slane %v665, %v669
        %v671 = vlaneseq
        %v672 = vshrl.u32 %v671, 7
        %v673 = vsub.s32 1, %v672
        %v674 = vrot.slane %v665, %v673
        %v675 = vlaneseq
        %v676 = vshrl.u32 %v675, 7
        %v677 = vsub.s32 2, %v676
        %v678 = vrot.slane %v665, %v677
        %p682 = scmp.gt.s32.totalorder %s26, 0
        %p683 = pnand %p682, %p295
        %p684 = pneg %p683
        // Predicated region
        $region69: #{tpu_custom_call.1} parent=39 // pred_check
          _
        $region70: #{tpu_custom_call.1} parent=39 // pred_check_branch
          %686 = sbr.rel (%p683) target = $region72
        $region71: #{tpu_custom_call.1} parent=39 // pred_region
          %s687 = sadd.s32 %s26, 1
          %p688 = scmp.lt.s32.totalorder %s687, 0
          %s689 = ssub.s32 0, %s687
          %s690 = scalar_select %p688, %s689, %s687
          %s691 = sand.u32 %s690, 1
          %s692 = ssub.s32 0, %s691
          %s693 = scalar_select %p688, %s692, %s691
          %v694 = vld [vmem:[#allocation9] sm:$0xff]
          %s695 = smul.u32 %s693, 12
          %s696 = smul.addr %s695, 8
          %s697 = scalar_lea.vmem [#allocation2], %s696
          %v698 = vld [vmem:[%s697] sm:$0xff]
          %v699 = vld [vmem:[%s697 + $0x8] sm:$0xff]
          %v700 = vld [vmem:[%s697 + $0x10] sm:$0xff]
          %v701 = vpack.c.bf16 %v694, %v694
          %v734 = vunpack.c.l.b16 %v633
          %v735 = vunpack.c.h.b16 %v633
          %v736 = vunpack.c.l.b16 %v634
          %v737 = vunpack.c.l.b16 %v635
          %v738 = vunpack.c.h.b16 %v635
          %v739 = vunpack.c.l.b16 %v636
          %v740 = vunpack.c.l.b16 %v637
          %v741 = vunpack.c.h.b16 %v637
          %v742 = vunpack.c.l.b16 %v638
          %v743 = vunpack.c.l.b16 %v639
          %v744 = vunpack.c.h.b16 %v639
          %v745 = vunpack.c.l.b16 %v640
          %v746 = vunpack.c.l.b16 %v641
          %v747 = vunpack.c.h.b16 %v641
          %v748 = vunpack.c.l.b16 %v642
          %v749 = vunpack.c.l.b16 %v643
          %v750 = vunpack.c.h.b16 %v643
          %v751 = vunpack.c.l.b16 %v644
          %v752 = vunpack.c.l.b16 %v645
          %v753 = vunpack.c.h.b16 %v645
          %v754 = vunpack.c.l.b16 %v646
          %v755 = vunpack.c.l.b16 %v647
          %v756 = vunpack.c.h.b16 %v647
          %v757 = vunpack.c.l.b16 %v648
          %v758 = vunpack.c.l.b16 %v649
          %v759 = vunpack.c.h.b16 %v649
          %v760 = vunpack.c.l.b16 %v650
          %v761 = vunpack.c.l.b16 %v651
          %v762 = vunpack.c.h.b16 %v651
          %v763 = vunpack.c.l.b16 %v652
          %v764 = vunpack.c.l.b16 %v653
          %v765 = vunpack.c.h.b16 %v653
          %v766 = vunpack.c.l.b16 %v654
          %v767 = vunpack.c.l.b16 %v655
          %v768 = vunpack.c.h.b16 %v655
          %v769 = vunpack.c.l.b16 %v656
          %v770 = vunpack.c.l.b16 %v657
          %v771 = vunpack.c.h.b16 %v657
          %v772 = vunpack.c.l.b16 %v658
          %v773 = vunpack.c.l.b16 %v659
          %v774 = vunpack.c.h.b16 %v659
          %v775 = vunpack.c.l.b16 %v660
          %v776 = vunpack.c.l.b16 %v661
          %v777 = vunpack.c.h.b16 %v661
          %v778 = vunpack.c.l.b16 %v662
          %v779 = vunpack.c.l.b16 %v663
          %v780 = vunpack.c.h.b16 %v663
          %v781 = vunpack.c.l.b16 %v664
          %v782 = vpack.c.b16 %v737, %v734
          %v783 = vpack.c.b16 %v738, %v735
          %v784 = vpack.c.b16 %v739, %v736
          %v785 = vpack.c.b16 %v743, %v740
          %v786 = vpack.c.b16 %v744, %v741
          %v787 = vpack.c.b16 %v745, %v742
          %v788 = vpack.c.b16 %v749, %v746
          %v789 = vpack.c.b16 %v750, %v747
          %v790 = vpack.c.b16 %v751, %v748
          %v791 = vpack.c.b16 %v755, %v752
          %v792 = vpack.c.b16 %v756, %v753
          %v793 = vpack.c.b16 %v757, %v754
          %v794 = vpack.c.b16 %v761, %v758
          %v795 = vpack.c.b16 %v762, %v759
          %v796 = vpack.c.b16 %v763, %v760
          %v797 = vpack.c.b16 %v767, %v764
          %v798 = vpack.c.b16 %v768, %v765
          %v799 = vpack.c.b16 %v769, %v766
          %v800 = vpack.c.b16 %v773, %v770
          %v801 = vpack.c.b16 %v774, %v771
          %v802 = vpack.c.b16 %v775, %v772
          %v803 = vpack.c.b16 %v779, %v776
          %v804 = vpack.c.b16 %v780, %v777
          %v805 = vpack.c.b16 %v781, %v778
          %830 = vmatprep.subr.bf16.mxu0 %v783
          %831 = vmatpush1.bf16.msra.mxu0 %v782
          %832 = vmatprep.subr.bf16.mxu0 %v786
          %833 = vmatpush1.bf16.msra.mxu0 %v785
          %834 = vmatprep.subr.bf16.mxu0 %v789
          %835 = vmatpush1.bf16.msra.mxu0 %v788
          %836 = vmatprep.subr.bf16.mxu0 %v792
          %837 = vmatpush1.bf16.msra.mxu0 %v791
          %838 = vmatprep.subr.bf16.mxu0 %v795
          %839 = vmatpush1.bf16.msra.mxu0 %v794
          %840 = vmatprep.subr.bf16.mxu0 %v798
          %841 = vmatpush1.bf16.msra.mxu0 %v797
          %842 = vmatprep.subr.bf16.mxu0 %v801
          %843 = vmatpush1.bf16.msra.mxu0 %v800
          %844 = vmatprep.subr.bf16.mxu0 %v804
          %845 = vmatpush1.bf16.msra.mxu0 %v803
          %846 = vmatprep.subr.bf16.mxu0 0
          %847 = vmatpush1.bf16.msra.mxu0 0
          %848 = vmatprep.subr.bf16.mxu0 0
          %849 = vmatpush1.bf16.msra.mxu0 0
          %850 = vmatprep.subr.bf16.mxu0 0
          %851 = vmatpush1.bf16.msra.mxu0 0
          %852 = vmatprep.subr.bf16.mxu0 0
          %853 = vmatpush1.bf16.msra.mxu0 0
          %854 = vmatprep.subr.bf16.mxu0 0
          %855 = vmatpush1.bf16.msra.mxu0 0
          %856 = vmatprep.subr.bf16.mxu0 0
          %857 = vmatpush1.bf16.msra.mxu0 0
          %858 = vmatprep.subr.bf16.mxu0 0
          %859 = vmatpush1.bf16.msra.mxu0 0
          %860 = vmatprep.subr.bf16.mxu0 0
          %861 = vmatpush1.bf16.msra.mxu0 0
          %862 = vmatprep.mubr.bf16.mxu0 0
          %863 = vmatmul.mubr.bf16.gmra.mrb[0].mxu0 %v701
          %v864 = vpop.f32.mrb[0].mxu0
          %v865 = vadd.f32 %v670, %v864
          %v866 = vpop.f32.mrb[0].mxu0
          %v867 = vadd.f32 %v674, %v866
          %v868 = vpop.f32.mrb[0].mxu0
          %v869 = vpop.f32.mrb[0].mxu0
          %870 = vdwg.mxu0
          %871 = vmatprep.subr.bf16.mxu0 0
          %872 = vmatpush1.bf16.msra.mxu0 %v784
          %873 = vmatprep.subr.bf16.mxu0 0
          %874 = vmatpush1.bf16.msra.mxu0 %v787
          %875 = vmatprep.subr.bf16.mxu0 0
          %876 = vmatpush1.bf16.msra.mxu0 %v790
          %877 = vmatprep.subr.bf16.mxu0 0
          %878 = vmatpush1.bf16.msra.mxu0 %v793
          %879 = vmatprep.subr.bf16.mxu0 0
          %880 = vmatpush1.bf16.msra.mxu0 %v796
          %881 = vmatprep.subr.bf16.mxu0 0
          %882 = vmatpush1.bf16.msra.mxu0 %v799
          %883 = vmatprep.subr.bf16.mxu0 0
          %884 = vmatpush1.bf16.msra.mxu0 %v802
          %885 = vmatprep.subr.bf16.mxu0 0
          %886 = vmatpush1.bf16.msra.mxu0 %v805
          %887 = vmatprep.subr.bf16.mxu0 0
          %888 = vmatpush1.bf16.msra.mxu0 0
          %889 = vmatprep.subr.bf16.mxu0 0
          %890 = vmatpush1.bf16.msra.mxu0 0
          %891 = vmatprep.subr.bf16.mxu0 0
          %892 = vmatpush1.bf16.msra.mxu0 0
          %893 = vmatprep.subr.bf16.mxu0 0
          %894 = vmatpush1.bf16.msra.mxu0 0
          %895 = vmatprep.subr.bf16.mxu0 0
          %896 = vmatpush1.bf16.msra.mxu0 0
          %897 = vmatprep.subr.bf16.mxu0 0
          %898 = vmatpush1.bf16.msra.mxu0 0
          %899 = vmatprep.subr.bf16.mxu0 0
          %900 = vmatpush1.bf16.msra.mxu0 0
          %901 = vmatprep.subr.bf16.mxu0 0
          %902 = vmatpush1.bf16.msra.mxu0 0
          %903 = vmatprep.mubr.bf16.mxu0 0
          %904 = vmatmul.mubr.bf16.gmra.mrb[0].mxu0 %v701
          %v905 = vpop.f32.mrb[0].mxu0
          %v906 = vadd.f32 %v678, %v905
          %v907 = vpop.f32.mrb[0].mxu0
          %v908 = vpop.f32.mrb[0].mxu0
          %v909 = vpop.f32.mrb[0].mxu0
          %910 = vdwg.mxu0
          %v911 = vadd.f32 %v698, %v865
          %v912 = vxor.u32 %v911, 2147483648
          %v913 = vmul.f32 %v912, 1.442695
          %v914 = vpow.pop %v913
          %v915 = vadd.f32 %v914, 1.0
          %v916 = vrcp.pop %v915
          %v917 = vmul.f32 1.0, %v916
          %v918 = vadd.f32 %v699, %v867
          %v919 = vxor.u32 %v918, 2147483648
          %v920 = vmul.f32 %v919, 1.442695
          %v921 = vpow.pop %v920
          %v922 = vadd.f32 %v921, 1.0
          %v923 = vrcp.pop %v922
          %v924 = vmul.f32 1.0, %v923
          %v925 = vmul.f32 %v917, %v906
          %v926 = vadd.f32 %v700, %v925
          %v927 = vtanh.pop %v926
          %v928 = vsub.f32 1.0, %v924
          %v929 = vmul.f32 %v928, %v927
          %v930 = vmul.f32 %v924, %v694
          %v931 = vadd.f32 %v929, %v930
          %s932 = scalar_lea.vmem %s697, 24 [#allocation2]
          %v933 = vld [vmem:[%s932] sm:$0xff]
          %v934 = vld [vmem:[%s932 + $0x8] sm:$0xff]
          %v935 = vld [vmem:[%s932 + $0x10] sm:$0xff]
          %v936 = vpack.c.bf16 %v931, %v931
          %937 = vmatprep.subr.bf16.mxu0 %v783
          %938 = vmatpush1.bf16.msra.mxu0 %v782
          %939 = vmatprep.subr.bf16.mxu0 %v786
          %940 = vmatpush1.bf16.msra.mxu0 %v785
          %941 = vmatprep.subr.bf16.mxu0 %v789
          %942 = vmatpush1.bf16.msra.mxu0 %v788
          %943 = vmatprep.subr.bf16.mxu0 %v792
          %944 = vmatpush1.bf16.msra.mxu0 %v791
          %945 = vmatprep.subr.bf16.mxu0 %v795
          %946 = vmatpush1.bf16.msra.mxu0 %v794
          %947 = vmatprep.subr.bf16.mxu0 %v798
          %948 = vmatpush1.bf16.msra.mxu0 %v797
          %949 = vmatprep.subr.bf16.mxu0 %v801
          %950 = vmatpush1.bf16.msra.mxu0 %v800
          %951 = vmatprep.subr.bf16.mxu0 %v804
          %952 = vmatpush1.bf16.msra.mxu0 %v803
          %953 = vmatprep.subr.bf16.mxu0 0
          %954 = vmatpush1.bf16.msra.mxu0 0
          %955 = vmatprep.subr.bf16.mxu0 0
          %956 = vmatpush1.bf16.msra.mxu0 0
          %957 = vmatprep.subr.bf16.mxu0 0
          %958 = vmatpush1.bf16.msra.mxu0 0
          %959 = vmatprep.subr.bf16.mxu0 0
          %960 = vmatpush1.bf16.msra.mxu0 0
          %961 = vmatprep.subr.bf16.mxu0 0
          %962 = vmatpush1.bf16.msra.mxu0 0
          %963 = vmatprep.subr.bf16.mxu0 0
          %964 = vmatpush1.bf16.msra.mxu0 0
          %965 = vmatprep.subr.bf16.mxu0 0
          %966 = vmatpush1.bf16.msra.mxu0 0
          %967 = vmatprep.subr.bf16.mxu0 0
          %968 = vmatpush1.bf16.msra.mxu0 0
          %969 = vmatprep.mubr.bf16.mxu0 0
          %970 = vmatmul.mubr.bf16.gmra.mrb[0].mxu0 %v936
          %v971 = vpop.f32.mrb[0].mxu0
          %v972 = vadd.f32 %v670, %v971
          %v973 = vpop.f32.mrb[0].mxu0
          %v974 = vadd.f32 %v674, %v973
          %v975 = vpop.f32.mrb[0].mxu0
          %v976 = vpop.f32.mrb[0].mxu0
          %977 = vdwg.mxu0
          %978 = vmatprep.subr.bf16.mxu0 0
          %979 = vmatpush1.bf16.msra.mxu0 %v784
          %980 = vmatprep.subr.bf16.mxu0 0
          %981 = vmatpush1.bf16.msra.mxu0 %v787
          %982 = vmatprep.subr.bf16.mxu0 0
          %983 = vmatpush1.bf16.msra.mxu0 %v790
          %984 = vmatprep.subr.bf16.mxu0 0
          %985 = vmatpush1.bf16.msra.mxu0 %v793
          %986 = vmatprep.subr.bf16.mxu0 0
          %987 = vmatpush1.bf16.msra.mxu0 %v796
          %988 = vmatprep.subr.bf16.mxu0 0
          %989 = vmatpush1.bf16.msra.mxu0 %v799
          %990 = vmatprep.subr.bf16.mxu0 0
          %991 = vmatpush1.bf16.msra.mxu0 %v802
          %992 = vmatprep.subr.bf16.mxu0 0
          %993 = vmatpush1.bf16.msra.mxu0 %v805
          %994 = vmatprep.subr.bf16.mxu0 0
          %995 = vmatpush1.bf16.msra.mxu0 0
          %996 = vmatprep.subr.bf16.mxu0 0
          %997 = vmatpush1.bf16.msra.mxu0 0
          %998 = vmatprep.subr.bf16.mxu0 0
          %999 = vmatpush1.bf16.msra.mxu0 0
          %1000 = vmatprep.subr.bf16.mxu0 0
          %1001 = vmatpush1.bf16.msra.mxu0 0
          %1002 = vmatprep.subr.bf16.mxu0 0
          %1003 = vmatpush1.bf16.msra.mxu0 0
          %1004 = vmatprep.subr.bf16.mxu0 0
          %1005 = vmatpush1.bf16.msra.mxu0 0
          %1006 = vmatprep.subr.bf16.mxu0 0
          %1007 = vmatpush1.bf16.msra.mxu0 0
          %1008 = vmatprep.subr.bf16.mxu0 0
          %1009 = vmatpush1.bf16.msra.mxu0 0
          %1010 = vmatprep.mubr.bf16.mxu0 0
          %1011 = vmatmul.mubr.bf16.gmra.mrb[0].mxu0 %v936
          %v1012 = vpop.f32.mrb[0].mxu0
          %v1013 = vadd.f32 %v678, %v1012
          %v1014 = vpop.f32.mrb[0].mxu0
          %v1015 = vpop.f32.mrb[0].mxu0
          %v1016 = vpop.f32.mrb[0].mxu0
          %1017 = vdwg.mxu0
          %v1018 = vadd.f32 %v933, %v972
          %v1019 = vxor.u32 %v1018, 2147483648
          %v1020 = vmul.f32 %v1019, 1.442695
          %v1021 = vpow.pop %v1020
          %v1022 = vadd.f32 %v1021, 1.0
          %v1023 = vrcp.pop %v1022
          %v1024 = vmul.f32 1.0, %v1023
          %v1025 = vadd.f32 %v934, %v974
          %v1026 = vxor.u32 %v1025, 2147483648
          %v1027 = vmul.f32 %v1026, 1.442695
          %v1028 = vpow.pop %v1027
          %v1029 = vadd.f32 %v1028, 1.0
          %v1030 = vrcp.pop %v1029
          %v1031 = vmul.f32 1.0, %v1030
          %v1032 = vmul.f32 %v1024, %v1013
          %v1033 = vadd.f32 %v935, %v1032
          %v1034 = vtanh.pop %v1033
          %v1035 = vsub.f32 1.0, %v1031
          %v1036 = vmul.f32 %v1035, %v1034
          %v1037 = vmul.f32 %v1031, %v931
          %v1038 = vadd.f32 %v1036, %v1037
          %s1039 = scalar_lea.vmem %s697, 48 [#allocation2]
          %v1040 = vld [vmem:[%s1039] sm:$0xff]
          %v1041 = vld [vmem:[%s1039 + $0x8] sm:$0xff]
          %v1042 = vld [vmem:[%s1039 + $0x10] sm:$0xff]
          %v1043 = vpack.c.bf16 %v1038, %v1038
          %1044 = vmatprep.subr.bf16.mxu0 %v783
          %1045 = vmatpush1.bf16.msra.mxu0 %v782
          %1046 = vmatprep.subr.bf16.mxu0 %v786
          %1047 = vmatpush1.bf16.msra.mxu0 %v785
          %1048 = vmatprep.subr.bf16.mxu0 %v789
          %1049 = vmatpush1.bf16.msra.mxu0 %v788
          %1050 = vmatprep.subr.bf16.mxu0 %v792
          %1051 = vmatpush1.bf16.msra.mxu0 %v791
          %1052 = vmatprep.subr.bf16.mxu0 %v795
          %1053 = vmatpush1.bf16.msra.mxu0 %v794
          %1054 = vmatprep.subr.bf16.mxu0 %v798
          %1055 = vmatpush1.bf16.msra.mxu0 %v797
          %1056 = vmatprep.subr.bf16.mxu0 %v801
          %1057 = vmatpush1.bf16.msra.mxu0 %v800
          %1058 = vmatprep.subr.bf16.mxu0 %v804
          %1059 = vmatpush1.bf16.msra.mxu0 %v803
          %1060 = vmatprep.subr.bf16.mxu0 0
          %1061 = vmatpush1.bf16.msra.mxu0 0
          %1062 = vmatprep.subr.bf16.mxu0 0
          %1063 = vmatpush1.bf16.msra.mxu0 0
          %1064 = vmatprep.subr.bf16.mxu0 0
          %1065 = vmatpush1.bf16.msra.mxu0 0
          %1066 = vmatprep.subr.bf16.mxu0 0
          %1067 = vmatpush1.bf16.msra.mxu0 0
          %1068 = vmatprep.subr.bf16.mxu0 0
          %1069 = vmatpush1.bf16.msra.mxu0 0
          %1070 = vmatprep.subr.bf16.mxu0 0
          %1071 = vmatpush1.bf16.msra.mxu0 0
          %1072 = vmatprep.subr.bf16.mxu0 0
          %1073 = vmatpush1.bf16.msra.mxu0 0
          %1074 = vmatprep.subr.bf16.mxu0 0
          %1075 = vmatpush1.bf16.msra.mxu0 0
          %1076 = vmatprep.mubr.bf16.mxu0 0
          %1077 = vmatmul.mubr.bf16.gmra.mrb[0].mxu0 %v1043
          %v1078 = vpop.f32.mrb[0].mxu0
          %v1079 = vadd.f32 %v670, %v1078
          %v1080 = vpop.f32.mrb[0].mxu0
          %v1081 = vadd.f32 %v674, %v1080
          %v1082 = vpop.f32.mrb[0].mxu0
          %v1083 = vpop.f32.mrb[0].mxu0
          %1084 = vdwg.mxu0
          %1085 = vmatprep.subr.bf16.mxu0 0
          %1086 = vmatpush1.bf16.msra.mxu0 %v784
          %1087 = vmatprep.subr.bf16.mxu0 0
          %1088 = vmatpush1.bf16.msra.mxu0 %v787
          %1089 = vmatprep.subr.bf16.mxu0 0
          %1090 = vmatpush1.bf16.msra.mxu0 %v790
          %1091 = vmatprep.subr.bf16.mxu0 0
          %1092 = vmatpush1.bf16.msra.mxu0 %v793
          %1093 = vmatprep.subr.bf16.mxu0 0
          %1094 = vmatpush1.bf16.msra.mxu0 %v796
          %1095 = vmatprep.subr.bf16.mxu0 0
          %1096 = vmatpush1.bf16.msra.mxu0 %v799
          %1097 = vmatprep.subr.bf16.mxu0 0
          %1098 = vmatpush1.bf16.msra.mxu0 %v802
          %1099 = vmatprep.subr.bf16.mxu0 0
          %1100 = vmatpush1.bf16.msra.mxu0 %v805
          %1101 = vmatprep.subr.bf16.mxu0 0
          %1102 = vmatpush1.bf16.msra.mxu0 0
          %1103 = vmatprep.subr.bf16.mxu0 0
          %1104 = vmatpush1.bf16.msra.mxu0 0
          %1105 = vmatprep.subr.bf16.mxu0 0
          %1106 = vmatpush1.bf16.msra.mxu0 0
          %1107 = vmatprep.subr.bf16.mxu0 0
          %1108 = vmatpush1.bf16.msra.mxu0 0
          %1109 = vmatprep.subr.bf16.mxu0 0
          %1110 = vmatpush1.bf16.msra.mxu0 0
          %1111 = vmatprep.subr.bf16.mxu0 0
          %1112 = vmatpush1.bf16.msra.mxu0 0
          %1113 = vmatprep.subr.bf16.mxu0 0
          %1114 = vmatpush1.bf16.msra.mxu0 0
          %1115 = vmatprep.subr.bf16.mxu0 0
          %1116 = vmatpush1.bf16.msra.mxu0 0
          %1117 = vmatprep.mubr.bf16.mxu0 0
          %1118 = vmatmul.mubr.bf16.gmra.mrb[0].mxu0 %v1043
          %v1119 = vpop.f32.mrb[0].mxu0
          %v1120 = vadd.f32 %v678, %v1119
          %v1121 = vpop.f32.mrb[0].mxu0
          %v1122 = vpop.f32.mrb[0].mxu0
          %v1123 = vpop.f32.mrb[0].mxu0
          %1124 = vdwg.mxu0
          %v1125 = vadd.f32 %v1040, %v1079
          %v1126 = vxor.u32 %v1125, 2147483648
          %v1127 = vmul.f32 %v1126, 1.442695
          %v1128 = vpow.pop %v1127
          %v1129 = vadd.f32 %v1128, 1.0
          %v1130 = vrcp.pop %v1129
          %v1131 = vmul.f32 1.0, %v1130
          %v1132 = vadd.f32 %v1041, %v1081
          %v1133 = vxor.u32 %v1132, 2147483648
          %v1134 = vmul.f32 %v1133, 1.442695
          %v1135 = vpow.pop %v1134
          %v1136 = vadd.f32 %v1135, 1.0
          %v1137 = vrcp.pop %v1136
          %v1138 = vmul.f32 1.0, %v1137
          %v1139 = vmul.f32 %v1131, %v1120
          %v1140 = vadd.f32 %v1042, %v1139
          %v1141 = vtanh.pop %v1140
          %v1142 = vsub.f32 1.0, %v1138
          %v1143 = vmul.f32 %v1142, %v1141
          %v1144 = vmul.f32 %v1138, %v1038
          %v1145 = vadd.f32 %v1143, %v1144
          %s1146 = scalar_lea.vmem %s697, 72 [#allocation2]
          %v1147 = vld [vmem:[%s1146] sm:$0xff]
          %v1148 = vld [vmem:[%s1146 + $0x8] sm:$0xff]
          %v1149 = vld [vmem:[%s1146 + $0x10] sm:$0xff]
          %v1150 = vpack.c.bf16 %v1145, %v1145
          %1151 = vmatprep.subr.bf16.mxu0 %v783
          %1152 = vmatpush1.bf16.msra.mxu0 %v782
          %1153 = vmatprep.subr.bf16.mxu0 %v786
          %1154 = vmatpush1.bf16.msra.mxu0 %v785
          %1155 = vmatprep.subr.bf16.mxu0 %v789
          %1156 = vmatpush1.bf16.msra.mxu0 %v788
          %1157 = vmatprep.subr.bf16.mxu0 %v792
          %1158 = vmatpush1.bf16.msra.mxu0 %v791
          %1159 = vmatprep.subr.bf16.mxu0 %v795
          %1160 = vmatpush1.bf16.msra.mxu0 %v794
          %1161 = vmatprep.subr.bf16.mxu0 %v798
          %1162 = vmatpush1.bf16.msra.mxu0 %v797
          %1163 = vmatprep.subr.bf16.mxu0 %v801
          %1164 = vmatpush1.bf16.msra.mxu0 %v800
          %1165 = vmatprep.subr.bf16.mxu0 %v804
          %1166 = vmatpush1.bf16.msra.mxu0 %v803
          %1167 = vmatprep.subr.bf16.mxu0 0
          %1168 = vmatpush1.bf16.msra.mxu0 0
          %1169 = vmatprep.subr.bf16.mxu0 0
          %1170 = vmatpush1.bf16.msra.mxu0 0
          %1171 = vmatprep.subr.bf16.mxu0 0
          %1172 = vmatpush1.bf16.msra.mxu0 0
          %1173 = vmatprep.subr.bf16.mxu0 0
          %1174 = vmatpush1.bf16.msra.mxu0 0
          %1175 = vmatprep.subr.bf16.mxu0 0
          %1176 = vmatpush1.bf16.msra.mxu0 0
          %1177 = vmatprep.subr.bf16.mxu0 0
          %1178 = vmatpush1.bf16.msra.mxu0 0
          %1179 = vmatprep.subr.bf16.mxu0 0
          %1180 = vmatpush1.bf16.msra.mxu0 0
          %1181 = vmatprep.subr.bf16.mxu0 0
          %1182 = vmatpush1.bf16.msra.mxu0 0
          %1183 = vmatprep.mubr.bf16.mxu0 0
          %1184 = vmatmul.mubr.bf16.gmra.mrb[0].mxu0 %v1150
          %v1185 = vpop.f32.mrb[0].mxu0
          %v1186 = vadd.f32 %v670, %v1185
          %v1187 = vpop.f32.mrb[0].mxu0
          %v1188 = vadd.f32 %v674, %v1187
          %v1189 = vpop.f32.mrb[0].mxu0
          %v1190 = vpop.f32.mrb[0].mxu0
          %1191 = vdwg.mxu0
          %1192 = vmatprep.subr.bf16.mxu0 0
          %1193 = vmatpush1.bf16.msra.mxu0 %v784
          %1194 = vmatprep.subr.bf16.mxu0 0
          %1195 = vmatpush1.bf16.msra.mxu0 %v787
          %1196 = vmatprep.subr.bf16.mxu0 0
          %1197 = vmatpush1.bf16.msra.mxu0 %v790
          %1198 = vmatprep.subr.bf16.mxu0 0
          %1199 = vmatpush1.bf16.msra.mxu0 %v793
          %1200 = vmatprep.subr.bf16.mxu0 0
          %1201 = vmatpush1.bf16.msra.mxu0 %v796
          %1202 = vmatprep.subr.bf16.mxu0 0
          %1203 = vmatpush1.bf16.msra.mxu0 %v799
          %1204 = vmatprep.subr.bf16.mxu0 0
          %1205 = vmatpush1.bf16.msra.mxu0 %v802
          %1206 = vmatprep.subr.bf16.mxu0 0
          %1207 = vmatpush1.bf16.msra.mxu0 %v805
          %1208 = vmatprep.subr.bf16.mxu0 0
          %1209 = vmatpush1.bf16.msra.mxu0 0
          %1210 = vmatprep.subr.bf16.mxu0 0
          %1211 = vmatpush1.bf16.msra.mxu0 0
          %1212 = vmatprep.subr.bf16.mxu0 0
          %1213 = vmatpush1.bf16.msra.mxu0 0
          %1214 = vmatprep.subr.bf16.mxu0 0
          %1215 = vmatpush1.bf16.msra.mxu0 0
          %1216 = vmatprep.subr.bf16.mxu0 0
          %1217 = vmatpush1.bf16.msra.mxu0 0
          %1218 = vmatprep.subr.bf16.mxu0 0
          %1219 = vmatpush1.bf16.msra.mxu0 0
          %1220 = vmatprep.subr.bf16.mxu0 0
          %1221 = vmatpush1.bf16.msra.mxu0 0
          %1222 = vmatprep.subr.bf16.mxu0 0
          %1223 = vmatpush1.bf16.msra.mxu0 0
          %1224 = vmatprep.mubr.bf16.mxu0 0
          %1225 = vmatmul.mubr.bf16.gmra.mrb[0].mxu0 %v1150
          %v1226 = vpop.f32.mrb[0].mxu0
          %v1227 = vadd.f32 %v678, %v1226
          %v1228 = vpop.f32.mrb[0].mxu0
          %v1229 = vpop.f32.mrb[0].mxu0
          %v1230 = vpop.f32.mrb[0].mxu0
          %1231 = vdwg.mxu0
          %v1232 = vadd.f32 %v1147, %v1186
          %v1233 = vxor.u32 %v1232, 2147483648
          %v1234 = vmul.f32 %v1233, 1.442695
          %v1235 = vpow.pop %v1234
          %v1236 = vadd.f32 %v1235, 1.0
          %v1237 = vrcp.pop %v1236
          %v1238 = vmul.f32 1.0, %v1237
          %v1239 = vadd.f32 %v1148, %v1188
          %v1240 = vxor.u32 %v1239, 2147483648
          %v1241 = vmul.f32 %v1240, 1.442695
          %v1242 = vpow.pop %v1241
          %v1243 = vadd.f32 %v1242, 1.0
          %v1244 = vrcp.pop %v1243
          %v1245 = vmul.f32 1.0, %v1244
          %v1246 = vmul.f32 %v1238, %v1227
          %v1247 = vadd.f32 %v1149, %v1246
          %v1248 = vtanh.pop %v1247
          %v1249 = vsub.f32 1.0, %v1245
          %v1250 = vmul.f32 %v1249, %v1248
          %v1251 = vmul.f32 %v1245, %v1145
          %v1252 = vadd.f32 %v1250, %v1251
          %1253 = vst [vmem:[#allocation9] sm:$0xff] %v1252
        $region72: #{tpu_custom_call.1} parent=39 // pred_fallthru
          _
        %p1254 = scmp.eq.s32.totalorder %s26, 3
        // Predicated region
        $region73: #{tpu_custom_call.1} parent=39 // pred_check
          %p1255 = pneg %p1254
        $region74: #{tpu_custom_call.1} parent=39 // pred_check_branch
          %1257 = sbr.rel (%p1255) target = $region76
        $region75: #{tpu_custom_call.1} parent=39 // pred_region
          %s1258 = sadd.s32 %s26, 1
          %p1259 = scmp.lt.s32.totalorder %s1258, 0
          %s1260 = ssub.s32 0, %s1258
          %s1261 = scalar_select %p1259, %s1260, %s1258
          %s1262 = sand.u32 %s1261, 1
          %s1263 = ssub.s32 0, %s1262
          %s1264 = scalar_select %p1259, %s1263, %s1262
          %v1265 = vld [vmem:[#allocation9] sm:$0xff]
          %s1266 = smul.u32 %s1264, 12
          %s1267 = smul.addr %s1266, 8
          %s1268 = scalar_lea.vmem [#allocation2], %s1267
          %v1269 = vld [vmem:[%s1268] sm:$0xff]
          %v1270 = vld [vmem:[%s1268 + $0x8] sm:$0xff]
          %v1271 = vld [vmem:[%s1268 + $0x10] sm:$0xff]
          %v1272 = vpack.c.bf16 %v1265, %v1265
          %v1305 = vunpack.c.l.b16 %v633
          %v1306 = vunpack.c.h.b16 %v633
          %v1307 = vunpack.c.l.b16 %v634
          %v1308 = vunpack.c.l.b16 %v635
          %v1309 = vunpack.c.h.b16 %v635
          %v1310 = vunpack.c.l.b16 %v636
          %v1311 = vunpack.c.l.b16 %v637
          %v1312 = vunpack.c.h.b16 %v637
          %v1313 = vunpack.c.l.b16 %v638
          %v1314 = vunpack.c.l.b16 %v639
          %v1315 = vunpack.c.h.b16 %v639
          %v1316 = vunpack.c.l.b16 %v640
          %v1317 = vunpack.c.l.b16 %v641
          %v1318 = vunpack.c.h.b16 %v641
          %v1319 = vunpack.c.l.b16 %v642
          %v1320 = vunpack.c.l.b16 %v643
          %v1321 = vunpack.c.h.b16 %v643
          %v1322 = vunpack.c.l.b16 %v644
          %v1323 = vunpack.c.l.b16 %v645
          %v1324 = vunpack.c.h.b16 %v645
          %v1325 = vunpack.c.l.b16 %v646
          %v1326 = vunpack.c.l.b16 %v647
          %v1327 = vunpack.c.h.b16 %v647
          %v1328 = vunpack.c.l.b16 %v648
          %v1329 = vunpack.c.l.b16 %v649
          %v1330 = vunpack.c.h.b16 %v649
          %v1331 = vunpack.c.l.b16 %v650
          %v1332 = vunpack.c.l.b16 %v651
          %v1333 = vunpack.c.h.b16 %v651
          %v1334 = vunpack.c.l.b16 %v652
          %v1335 = vunpack.c.l.b16 %v653
          %v1336 = vunpack.c.h.b16 %v653
          %v1337 = vunpack.c.l.b16 %v654
          %v1338 = vunpack.c.l.b16 %v655
          %v1339 = vunpack.c.h.b16 %v655
          %v1340 = vunpack.c.l.b16 %v656
          %v1341 = vunpack.c.l.b16 %v657
          %v1342 = vunpack.c.h.b16 %v657
          %v1343 = vunpack.c.l.b16 %v658
          %v1344 = vunpack.c.l.b16 %v659
          %v1345 = vunpack.c.h.b16 %v659
          %v1346 = vunpack.c.l.b16 %v660
          %v1347 = vunpack.c.l.b16 %v661
          %v1348 = vunpack.c.h.b16 %v661
          %v1349 = vunpack.c.l.b16 %v662
          %v1350 = vunpack.c.l.b16 %v663
          %v1351 = vunpack.c.h.b16 %v663
          %v1352 = vunpack.c.l.b16 %v664
          %v1353 = vpack.c.b16 %v1308, %v1305
          %v1354 = vpack.c.b16 %v1309, %v1306
          %v1355 = vpack.c.b16 %v1310, %v1307
          %v1356 = vpack.c.b16 %v1314, %v1311
          %v1357 = vpack.c.b16 %v1315, %v1312
          %v1358 = vpack.c.b16 %v1316, %v1313
          %v1359 = vpack.c.b16 %v1320, %v1317
          %v1360 = vpack.c.b16 %v1321, %v1318
          %v1361 = vpack.c.b16 %v1322, %v1319
          %v1362 = vpack.c.b16 %v1326, %v1323
          %v1363 = vpack.c.b16 %v1327, %v1324
          %v1364 = vpack.c.b16 %v1328, %v1325
          %v1365 = vpack.c.b16 %v1332, %v1329
          %v1366 = vpack.c.b16 %v1333, %v1330
          %v1367 = vpack.c.b16 %v1334, %v1331
          %v1368 = vpack.c.b16 %v1338, %v1335
          %v1369 = vpack.c.b16 %v1339, %v1336
          %v1370 = vpack.c.b16 %v1340, %v1337
          %v1371 = vpack.c.b16 %v1344, %v1341
          %v1372 = vpack.c.b16 %v1345, %v1342
          %v1373 = vpack.c.b16 %v1346, %v1343
          %v1374 = vpack.c.b16 %v1350, %v1347
          %v1375 = vpack.c.b16 %v1351, %v1348
          %v1376 = vpack.c.b16 %v1352, %v1349
          %1401 = vmatprep.subr.bf16.mxu0 %v1354
          %1402 = vmatpush1.bf16.msra.mxu0 %v1353
          %1403 = vmatprep.subr.bf16.mxu0 %v1357
          %1404 = vmatpush1.bf16.msra.mxu0 %v1356
          %1405 = vmatprep.subr.bf16.mxu0 %v1360
          %1406 = vmatpush1.bf16.msra.mxu0 %v1359
          %1407 = vmatprep.subr.bf16.mxu0 %v1363
          %1408 = vmatpush1.bf16.msra.mxu0 %v1362
          %1409 = vmatprep.subr.bf16.mxu0 %v1366
          %1410 = vmatpush1.bf16.msra.mxu0 %v1365
          %1411 = vmatprep.subr.bf16.mxu0 %v1369
          %1412 = vmatpush1.bf16.msra.mxu0 %v1368
          %1413 = vmatprep.subr.bf16.mxu0 %v1372
          %1414 = vmatpush1.bf16.msra.mxu0 %v1371
          %1415 = vmatprep.subr.bf16.mxu0 %v1375
          %1416 = vmatpush1.bf16.msra.mxu0 %v1374
          %1417 = vmatprep.subr.bf16.mxu0 0
          %1418 = vmatpush1.bf16.msra.mxu0 0
          %1419 = vmatprep.subr.bf16.mxu0 0
          %1420 = vmatpush1.bf16.msra.mxu0 0
          %1421 = vmatprep.subr.bf16.mxu0 0
          %1422 = vmatpush1.bf16.msra.mxu0 0
          %1423 = vmatprep.subr.bf16.mxu0 0
          %1424 = vmatpush1.bf16.msra.mxu0 0
          %1425 = vmatprep.subr.bf16.mxu0 0
          %1426 = vmatpush1.bf16.msra.mxu0 0
          %1427 = vmatprep.subr.bf16.mxu0 0
          %1428 = vmatpush1.bf16.msra.mxu0 0
          %1429 = vmatprep.subr.bf16.mxu0 0
          %1430 = vmatpush1.bf16.msra.mxu0 0
          %1431 = vmatprep.subr.bf16.mxu0 0
          %1432 = vmatpush1.bf16.msra.mxu0 0
          %1433 = vmatprep.mubr.bf16.mxu0 0
          %1434 = vmatmul.mubr.bf16.gmra.mrb[0].mxu0 %v1272
          %v1435 = vpop.f32.mrb[0].mxu0
          %v1436 = vadd.f32 %v670, %v1435
          %v1437 = vpop.f32.mrb[0].mxu0
          %v1438 = vadd.f32 %v674, %v1437
          %v1439 = vpop.f32.mrb[0].mxu0
          %v1440 = vpop.f32.mrb[0].mxu0
          %1441 = vdwg.mxu0
          %1442 = vmatprep.subr.bf16.mxu0 0
          %1443 = vmatpush1.bf16.msra.mxu0 %v1355
          %1444 = vmatprep.subr.bf16.mxu0 0
          %1445 = vmatpush1.bf16.msra.mxu0 %v1358
          %1446 = vmatprep.subr.bf16.mxu0 0
          %1447 = vmatpush1.bf16.msra.mxu0 %v1361
          %1448 = vmatprep.subr.bf16.mxu0 0
          %1449 = vmatpush1.bf16.msra.mxu0 %v1364
          %1450 = vmatprep.subr.bf16.mxu0 0
          %1451 = vmatpush1.bf16.msra.mxu0 %v1367
          %1452 = vmatprep.subr.bf16.mxu0 0
          %1453 = vmatpush1.bf16.msra.mxu0 %v1370
          %1454 = vmatprep.subr.bf16.mxu0 0
          %1455 = vmatpush1.bf16.msra.mxu0 %v1373
          %1456 = vmatprep.subr.bf16.mxu0 0
          %1457 = vmatpush1.bf16.msra.mxu0 %v1376
          %1458 = vmatprep.subr.bf16.mxu0 0
          %1459 = vmatpush1.bf16.msra.mxu0 0
          %1460 = vmatprep.subr.bf16.mxu0 0
          %1461 = vmatpush1.bf16.msra.mxu0 0
          %1462 = vmatprep.subr.bf16.mxu0 0
          %1463 = vmatpush1.bf16.msra.mxu0 0
          %1464 = vmatprep.subr.bf16.mxu0 0
          %1465 = vmatpush1.bf16.msra.mxu0 0
          %1466 = vmatprep.subr.bf16.mxu0 0
          %1467 = vmatpush1.bf16.msra.mxu0 0
          %1468 = vmatprep.subr.bf16.mxu0 0
          %1469 = vmatpush1.bf16.msra.mxu0 0
          %1470 = vmatprep.subr.bf16.mxu0 0
          %1471 = vmatpush1.bf16.msra.mxu0 0
          %1472 = vmatprep.subr.bf16.mxu0 0
          %1473 = vmatpush1.bf16.msra.mxu0 0
          %1474 = vmatprep.mubr.bf16.mxu0 0
          %1475 = vmatmul.mubr.bf16.gmra.mrb[0].mxu0 %v1272
          %v1476 = vpop.f32.mrb[0].mxu0
          %v1477 = vadd.f32 %v678, %v1476
          %v1478 = vpop.f32.mrb[0].mxu0
          %v1479 = vpop.f32.mrb[0].mxu0
          %v1480 = vpop.f32.mrb[0].mxu0
          %1481 = vdwg.mxu0
          %v1482 = vadd.f32 %v1269, %v1436
          %v1483 = vxor.u32 %v1482, 2147483648
          %v1484 = vmul.f32 %v1483, 1.442695
          %v1485 = vpow.pop %v1484
          %v1486 = vadd.f32 %v1485, 1.0
          %v1487 = vrcp.pop %v1486
          %v1488 = vmul.f32 1.0, %v1487
          %v1489 = vadd.f32 %v1270, %v1438
          %v1490 = vxor.u32 %v1489, 2147483648
          %v1491 = vmul.f32 %v1490, 1.442695
          %v1492 = vpow.pop %v1491
          %v1493 = vadd.f32 %v1492, 1.0
          %v1494 = vrcp.pop %v1493
          %v1495 = vmul.f32 1.0, %v1494
          %v1496 = vmul.f32 %v1488, %v1477
          %v1497 = vadd.f32 %v1271, %v1496
          %v1498 = vtanh.pop %v1497
          %v1499 = vsub.f32 1.0, %v1495
          %v1500 = vmul.f32 %v1499, %v1498
          %v1501 = vmul.f32 %v1495, %v1265
          %v1502 = vadd.f32 %v1500, %v1501
          %s1503 = scalar_lea.vmem %s1268, 24 [#allocation2]
          %v1504 = vld [vmem:[%s1503] sm:$0xff]
          %v1505 = vld [vmem:[%s1503 + $0x8] sm:$0xff]
          %v1506 = vld [vmem:[%s1503 + $0x10] sm:$0xff]
          %v1507 = vpack.c.bf16 %v1502, %v1502
          %1508 = vmatprep.subr.bf16.mxu0 %v1354
          %1509 = vmatpush1.bf16.msra.mxu0 %v1353
          %1510 = vmatprep.subr.bf16.mxu0 %v1357
          %1511 = vmatpush1.bf16.msra.mxu0 %v1356
          %1512 = vmatprep.subr.bf16.mxu0 %v1360
          %1513 = vmatpush1.bf16.msra.mxu0 %v1359
          %1514 = vmatprep.subr.bf16.mxu0 %v1363
          %1515 = vmatpush1.bf16.msra.mxu0 %v1362
          %1516 = vmatprep.subr.bf16.mxu0 %v1366
          %1517 = vmatpush1.bf16.msra.mxu0 %v1365
          %1518 = vmatprep.subr.bf16.mxu0 %v1369
          %1519 = vmatpush1.bf16.msra.mxu0 %v1368
          %1520 = vmatprep.subr.bf16.mxu0 %v1372
          %1521 = vmatpush1.bf16.msra.mxu0 %v1371
          %1522 = vmatprep.subr.bf16.mxu0 %v1375
          %1523 = vmatpush1.bf16.msra.mxu0 %v1374
          %1524 = vmatprep.subr.bf16.mxu0 0
          %1525 = vmatpush1.bf16.msra.mxu0 0
          %1526 = vmatprep.subr.bf16.mxu0 0
          %1527 = vmatpush1.bf16.msra.mxu0 0
          %1528 = vmatprep.subr.bf16.mxu0 0
          %1529 = vmatpush1.bf16.msra.mxu0 0
          %1530 = vmatprep.subr.bf16.mxu0 0
          %1531 = vmatpush1.bf16.msra.mxu0 0
          %1532 = vmatprep.subr.bf16.mxu0 0
          %1533 = vmatpush1.bf16.msra.mxu0 0
          %1534 = vmatprep.subr.bf16.mxu0 0
          %1535 = vmatpush1.bf16.msra.mxu0 0
          %1536 = vmatprep.subr.bf16.mxu0 0
          %1537 = vmatpush1.bf16.msra.mxu0 0
          %1538 = vmatprep.subr.bf16.mxu0 0
          %1539 = vmatpush1.bf16.msra.mxu0 0
          %1540 = vmatprep.mubr.bf16.mxu0 0
          %1541 = vmatmul.mubr.bf16.gmra.mrb[0].mxu0 %v1507
          %v1542 = vpop.f32.mrb[0].mxu0
          %v1543 = vadd.f32 %v670, %v1542
          %v1544 = vpop.f32.mrb[0].mxu0
          %v1545 = vadd.f32 %v674, %v1544
          %v1546 = vpop.f32.mrb[0].mxu0
          %v1547 = vpop.f32.mrb[0].mxu0
          %1548 = vdwg.mxu0
          %1549 = vmatprep.subr.bf16.mxu0 0
          %1550 = vmatpush1.bf16.msra.mxu0 %v1355
          %1551 = vmatprep.subr.bf16.mxu0 0
          %1552 = vmatpush1.bf16.msra.mxu0 %v1358
          %1553 = vmatprep.subr.bf16.mxu0 0
          %1554 = vmatpush1.bf16.msra.mxu0 %v1361
          %1555 = vmatprep.subr.bf16.mxu0 0
          %1556 = vmatpush1.bf16.msra.mxu0 %v1364
          %1557 = vmatprep.subr.bf16.mxu0 0
          %1558 = vmatpush1.bf16.msra.mxu0 %v1367
          %1559 = vmatprep.subr.bf16.mxu0 0
          %1560 = vmatpush1.bf16.msra.mxu0 %v1370
          %1561 = vmatprep.subr.bf16.mxu0 0
          %1562 = vmatpush1.bf16.msra.mxu0 %v1373
          %1563 = vmatprep.subr.bf16.mxu0 0
          %1564 = vmatpush1.bf16.msra.mxu0 %v1376
          %1565 = vmatprep.subr.bf16.mxu0 0
          %1566 = vmatpush1.bf16.msra.mxu0 0
          %1567 = vmatprep.subr.bf16.mxu0 0
          %1568 = vmatpush1.bf16.msra.mxu0 0
          %1569 = vmatprep.subr.bf16.mxu0 0
          %1570 = vmatpush1.bf16.msra.mxu0 0
          %1571 = vmatprep.subr.bf16.mxu0 0
          %1572 = vmatpush1.bf16.msra.mxu0 0
          %1573 = vmatprep.subr.bf16.mxu0 0
          %1574 = vmatpush1.bf16.msra.mxu0 0
          %1575 = vmatprep.subr.bf16.mxu0 0
          %1576 = vmatpush1.bf16.msra.mxu0 0
          %1577 = vmatprep.subr.bf16.mxu0 0
          %1578 = vmatpush1.bf16.msra.mxu0 0
          %1579 = vmatprep.subr.bf16.mxu0 0
          %1580 = vmatpush1.bf16.msra.mxu0 0
          %1581 = vmatprep.mubr.bf16.mxu0 0
          %1582 = vmatmul.mubr.bf16.gmra.mrb[0].mxu0 %v1507
          %v1583 = vpop.f32.mrb[0].mxu0
          %v1584 = vadd.f32 %v678, %v1583
          %v1585 = vpop.f32.mrb[0].mxu0
          %v1586 = vpop.f32.mrb[0].mxu0
          %v1587 = vpop.f32.mrb[0].mxu0
          %1588 = vdwg.mxu0
          %v1589 = vadd.f32 %v1504, %v1543
          %v1590 = vxor.u32 %v1589, 2147483648
          %v1591 = vmul.f32 %v1590, 1.442695
          %v1592 = vpow.pop %v1591
          %v1593 = vadd.f32 %v1592, 1.0
          %v1594 = vrcp.pop %v1593
          %v1595 = vmul.f32 1.0, %v1594
          %v1596 = vadd.f32 %v1505, %v1545
          %v1597 = vxor.u32 %v1596, 2147483648
          %v1598 = vmul.f32 %v1597, 1.442695
          %v1599 = vpow.pop %v1598
          %v1600 = vadd.f32 %v1599, 1.0
          %v1601 = vrcp.pop %v1600
          %v1602 = vmul.f32 1.0, %v1601
          %v1603 = vmul.f32 %v1595, %v1584
          %v1604 = vadd.f32 %v1506, %v1603
          %v1605 = vtanh.pop %v1604
          %v1606 = vsub.f32 1.0, %v1602
          %v1607 = vmul.f32 %v1606, %v1605
          %v1608 = vmul.f32 %v1602, %v1502
          %v1609 = vadd.f32 %v1607, %v1608
          %1610 = vst [vmem:[#allocation9] sm:$0xff] %v1609
        $region76: #{tpu_custom_call.1} parent=39 // pred_fallthru
          _
        // Predicated region
        $region77: #{tpu_custom_call.1} parent=39 // pred_check
          %p1611 = pneg %p167
        $region78: #{tpu_custom_call.1} parent=39 // pred_check_branch
          %1613 = sbr.rel (%p1611) target = $region80
        $region79: #{tpu_custom_call.1} parent=39 // pred_region
          %s1615 = ssub.s32 128, 128
          %1616 = vsyncadd [#allocation5], %s1615
          %s1617 = smul.addr %s25, 128
          %s1618 = scalar_lea.hbm %s5, %s1617
          %s1620 = sshll.u32 [#allocation9], 4
          %s1621 = int_to_ptr.vmem [resolvable:$true] %s1620
          %1623 = dma.vmem_to_hbm [thread:$0]  %s1621, 128, %s1618, [#allocation5]
        $region80: #{tpu_custom_call.1} parent=39 // pred_fallthru
          _
        // Predicated region
        $region81: #{tpu_custom_call.1} parent=39 // pred_check
          %p1624 = pneg %p167
        $region82: #{tpu_custom_call.1} parent=39 // pred_check_branch
          %1626 = sbr.rel (%p1624) target = $region84
        $region83: #{tpu_custom_call.1} parent=39 // pred_region
          %1627 = dma.done [#allocation5], 128
        $region84: #{tpu_custom_call.1} parent=39 // pred_fallthru
          _
      $region40: #{tpu_custom_call.1} parent=5 // pred_fallthru
        _
      %p1628 = scmp.le.s32.totalorder 2, %s16
      // Predicated region
      $region85: #{tpu_custom_call.1} parent=5 // pred_check
        %p1629 = pneg %p1628
      $region86: #{tpu_custom_call.1} parent=5 // pred_check_branch
        %1631 = sbr.rel (%p1629) target = $region88
      $region87: #{tpu_custom_call.1} parent=5 // pred_region
        %s1632 = ssub.s32 %s16, 2
      $region88: #{tpu_custom_call.1} parent=5 // pred_fallthru
        _
    $region6: #{tpu_custom_call.1} parent=1 // loop_footer
      %s20 = sadd.s32 1, %s16
    $region7: #{tpu_custom_call.1} parent=1 // loop_footer_branch
      %15 = sbr.rel target = $region3
    $region8: #{tpu_custom_call.1} parent=1 // loop_exit
      _
    %1633 = vsyncpa [#allocation4], 1
    %s1634 = scalar_lea.sflag [#allocation4], 1
    %1635 = vsyncpa %s1634, 1
    %1636 = vsyncpa [#allocation7], 1
    %1637 = vsyncpa [#allocation5], 1
    %s1638 = scalar_lea.sflag [#allocation5], 1
    %1639 = vsyncpa %s1638, 1

</llo_original>
